<compile_context>
chip_gen: v7x
topology: tpu7x:2x2x1
jax: 0.10.0
libtpu: 0.0.40
codegen_flags: <defaults>
</compile_context>

<pallas_src>
import functools
import numpy as np
import jax
import jax.numpy as jnp
from jax.experimental import pallas as pl
from jax.experimental.pallas import tpu as pltpu

# ----------------------------- "args" (deterministic config) ----------------
SIGNAL_WINDOW_SIZE = 16          # power of 2 (asserted in the PyTorch module)
MF_TIME_SLICE_INTERVAL = 1
TIME_POINTS = SIGNAL_WINDOW_SIZE // MF_TIME_SLICE_INTERVAL
MF_MAXPOOL_SIZE = 1              # 1 => no MaxPool3d (pooling>1 is incompatible
                                 # with the (Ld,8,8) conv kernel anyway)
MF_NEGATIVE_SLOPE = 0.02
MF_DROPOUT_RATE = 0.1            # Dropout3d is identity in eval mode
DWT_WAVELET = "db2"
DWT_LEVEL = 2
DWT_NUM_FILTERS = 10
HGT = 8
WID = 8
S = HGT * WID                    # 64 flattened spatial points

# pywt 'db2' decomposition filters
DB2_DEC_LO = np.array([-0.12940952255092145, 0.22414386804185735,
                       0.8365163037378079, 0.48296291314469025], dtype=np.float64)
DB2_DEC_HI = np.array([-0.48296291314469025, 0.8365163037378079,
                       -0.22414386804185735, -0.12940952255092145], dtype=np.float64)


# ----------------------------- reference DWT (pytorch_wavelets AFB1D) -------
def _afb1d_reflect(x, dec_lo, dec_hi):
    """Single-level analysis filter bank along the last axis, mode='reflect'."""
    n = x.shape[-1]
    L = len(dec_lo)
    outsize = (n + L - 1) // 2
    p = 2 * (outsize - 1) - n + L
    pad = [(0, 0)] * (x.ndim - 1) + [(p // 2, (p + 1) // 2)]
    xp = np.pad(x, pad, mode="reflect")
    # prep_filt reverses the decomposition filters, conv2d is cross-correlation
    h0r = dec_lo[::-1]
    h1r = dec_hi[::-1]
    lo = np.zeros(x.shape[:-1] + (outsize,), dtype=np.float64)
    hi = np.zeros_like(lo)
    for i in range(outsize):
        seg = xp[..., 2 * i:2 * i + L]
        lo[..., i] = seg @ h0r
        hi[..., i] = seg @ h1r
    return lo, hi


def _dwt_concat(x, dec_lo, dec_hi, J):
    """J-level DWT along last axis, concatenated as [lo_J, hi_1, ..., hi_J]."""
    lo = x.astype(np.float64)
    his = []
    for _ in range(J):
        lo, hi = _afb1d_reflect(lo, dec_lo, dec_hi)
        his.append(hi)
    return np.concatenate([lo] + his, axis=-1)


def build_dwt_matrix(T, dec_lo, dec_hi, J):
    """The DWT is linear: build D (Ld, T) with concat_dwt(v) == D @ v."""
    basis = np.eye(T, dtype=np.float64)            # row t = e_t
    rows = _dwt_concat(basis, dec_lo, dec_hi, J)   # (T, Ld)
    return np.ascontiguousarray(rows.T)            # (Ld, T)


def fold_dwt_weights(W, D):
    """Fold the DWT matrix into the conv weights (offline, fp64).

    W: (F, 1, Ld, 8, 8) conv weight, D: (Ld, T) DWT analysis matrix.
    Returns w_fold (F, T*64) fp32 with
        z[f] = sum_{t,s} w_fold[f, t*64+s] * x[t, s]  ==  conv(dwt(x)).
    """
    F = W.shape[0]
    Ld, T = D.shape
    Wsq = np.asarray(W, dtype=np.float64).reshape(F, Ld, S)     # (F, Ld, 64)
    folded = np.einsum("fls,lt->fts", Wsq, np.asarray(D, np.float64))
    return np.ascontiguousarray(folded.reshape(F, T * S)).astype(np.float32)


# ----------------------------- Pallas kernel --------------------------------
def dwt_feature_kernel(x_ref, w_ref, b_ref, o_ref, *, neg_slope):
    # x_ref: (TILE_N, K) f32 (or bf16) streamed sample block, lane-dense (K % 128 == 0)
    # w_ref: (K, F)      bf16  DWT-folded conv weight, natural MXU-RHS layout, resident
    # b_ref: (1, F)      f32   conv bias, resident
    # o_ref: (TILE_N, F) f32   output block (F=10 -> tiny masked store, negligible)
    xb = x_ref[...].astype(jnp.bfloat16)            # VPU cast right before the MXU
    z = jnp.dot(xb, w_ref[...],                     # one skinny MXU matmul, f32 acc
                preferred_element_type=jnp.float32)  # (TILE_N, F)
    z = z + b_ref[...]                               # bias (broadcast over rows)
    # Dropout3d: identity in eval mode.  LeakyReLU in fp32:
    o_ref[...] = jnp.where(z >= 0.0, z, neg_slope * z)


def _pick_tile_n(n, max_tile=1024):
    """Largest-reasonable row tile, >=2 grid blocks when possible (v7x megacore),
    rounded up to the sublane multiple (8)."""
    tile = min(max_tile, max(4, -(-n // 2)))   # cdiv(n, 2), capped at max_tile
    tile = -(-tile // 8) * 8                   # round up to multiple of 8
    return int(tile)


@functools.partial(jax.jit, static_argnames=("neg_slope", "tile_n"))
def _forward_impl(xk, w_kf, b_row, neg_slope, tile_n):
    N, K = xk.shape
    F = w_kf.shape[1]
    return pl.pallas_call(
        functools.partial(dwt_feature_kernel, neg_slope=neg_slope),
        out_shape=jax.ShapeDtypeStruct((N, F), jnp.float32),
        grid=(pl.cdiv(N, tile_n),),             # ragged tail -> masked edge block
        in_specs=[
            pl.BlockSpec((tile_n, K), lambda i: (i, 0)),   # streamed samples
            pl.BlockSpec((K, F), lambda i: (0, 0)),        # resident weight (no re-DMA)
            pl.BlockSpec((1, F), lambda i: (0, 0)),        # resident bias
        ],
        out_specs=pl.BlockSpec((tile_n, F), lambda i: (i, 0)),
        compiler_params=pltpu.CompilerParams(
            dimension_semantics=("parallel",)),            # megacore on v7x
    )(xk, w_kf, b_row)


def dwt_feature_model_forward(x, w_fold, bias, neg_slope=MF_NEGATIVE_SLOPE,
                              max_tile_n=1024):
    """x: (N, 1, T, 8, 8) f32 (or bf16), w_fold: (F, T*64) -> (N, num_filters) f32.

    No wrapper pad / cast HBM passes: x is only reshaped (metadata-only) and the
    kernel DMAs it as-is, casting to bf16 in-kernel.  The folded weight (40 KB)
    is transposed+cast once to its natural (K, F) bf16 MXU layout.
    """
    N = x.shape[0]
    T = x.shape[2]
    F, K = w_fold.shape
    assert K == T * HGT * WID
    xk = x.reshape(N, K)                                   # lane-dense, free reshape
    w_kf = jnp.asarray(w_fold).T.astype(jnp.bfloat16)      # (K, F), tiny & resident
    b_row = jnp.asarray(bias, jnp.float32).reshape(1, F)
    tile_n = _pick_tile_n(N, max_tile_n)
    # tile_n<=1024: f32 x double-buffer is ~8 MiB -> inside every generation's
    # scoped-VMEM default; no vmem_limit_bytes override needed.
    return _forward_impl(xk, w_kf, b_row, float(neg_slope), tile_n)


# ----------------------------- pure-numpy reference --------------------------
def reference_forward(x, dec_lo, dec_hi, J, W, bias, neg_slope):
    """Exact (fp64) AFB1D-based reference of the PyTorch forward."""
    x = np.asarray(x, dtype=np.float64)          # (N, 1, T, 8, 8)
    W = np.asarray(W, dtype=np.float64)          # (F, 1, Ld, 8, 8)
    bias = np.asarray(bias, dtype=np.float64)
    xt = np.transpose(x[:, 0], (0, 2, 3, 1))     # (N, 8, 8, T)
    coeffs = _dwt_concat(xt, dec_lo, dec_hi, J)  # (N, 8, 8, Ld)
    z = np.einsum("flhw,nhwl->nf", W[:, 0], coeffs) + bias
    return np.where(z >= 0.0, z, neg_slope * z)


# ----------------------------- main ------------------------------------------
if __name__ == "__main__":
    N = 300            # exercises the ragged tail (tile 152 -> blocks of 152 + 148)
    T = TIME_POINTS
    F = DWT_NUM_FILTERS

    # DWT analysis matrix and output length (matches the module's __init__ probe)
    D = build_dwt_matrix(T, DB2_DEC_LO, DB2_DEC_HI, DWT_LEVEL)
    Ld = D.shape[0]    # dwt_output_length (== 21 for T=16, db2, J=2)

    # Deterministic parameters / inputs
    key = jax.random.PRNGKey(0)
    kx, kw, kb = jax.random.split(key, 3)
    x = jax.random.normal(kx, (N, 1, T, HGT, WID), dtype=jnp.float32)
    fan_in = 1 * Ld * HGT * WID
    bound = 1.0 / np.sqrt(fan_in)
    W = jax.random.uniform(kw, (F, 1, Ld, HGT, WID), dtype=jnp.float32,
                           minval=-bound, maxval=bound)
    bias = jax.random.uniform(kb, (F,), dtype=jnp.float32,
                              minval=-bound, maxval=bound)

    # TODO(synk): training-mode Dropout3d (stochastic whole-channel drop) not
    # implemented; kernel reproduces eval/inference semantics (identity).

    # Offline fold of DWT into the conv weights.
    w_fold = fold_dwt_weights(np.asarray(W), D)          # (F, T*64) fp32

    out = dwt_feature_model_forward(x, jnp.asarray(w_fold), bias,
                                    neg_slope=MF_NEGATIVE_SLOPE)
    out = jax.block_until_ready(out)
    assert out.shape == (N, F), out.shape

    # (1) Tight numerical check against a reference applying the SAME bf16
    #     quantization (fp64 accumulate) -> only summation-order differences remain.
    x_np = np.asarray(x).reshape(N, T * S)
    x_bf = np.asarray(jnp.asarray(x_np).astype(jnp.bfloat16).astype(jnp.float32),
                      dtype=np.float64)
    w_bf = np.asarray(jnp.asarray(w_fold).astype(jnp.bfloat16).astype(jnp.float32),
                      dtype=np.float64)
    z = x_bf @ w_bf.T + np.asarray(bias, dtype=np.float64)
    ref_bf16 = np.where(z >= 0.0, z, MF_NEGATIVE_SLOPE * z)
    np.testing.assert_allclose(np.asarray(out), ref_bf16, rtol=1e-3, atol=1e-3)

    # (2) Semantic check against the exact fp64 AFB1D reference (tolerance
    #     loosened to cover the bf16 quantization of x and w_fold).
    ref = reference_forward(np.asarray(x), DB2_DEC_LO, DB2_DEC_HI, DWT_LEVEL,
                            np.asarray(W), np.asarray(bias), MF_NEGATIVE_SLOPE)
    np.testing.assert_allclose(np.asarray(out), ref, rtol=5e-2, atol=5e-2)

    print("KERNEL_OK")
</pallas_src>

<mosaic_0001>
module attributes {stable_mosaic.version = 11 : i64} {
  func.func @dwt_feature_kernel(%arg0: i32, %arg1: memref<152x1024xf32, #tpu.memory_space<vmem>>, %arg2: memref<1024x10xbf16, #tpu.memory_space<vmem>>, %arg3: memref<1x10xf32, #tpu.memory_space<vmem>>, %arg4: memref<152x10xf32, #tpu.memory_space<vmem>>) attributes {dimension_semantics = [#tpu.dimension_semantics<parallel>], iteration_bounds = array<i64: 2>, scalar_prefetch = 0 : i64, scratch_operands = 0 : i64, tpu.core_type = #tpu.core_type<tc>, window_params = [{transform_indices = @transform_0, window_bounds = array<i64: 152, 1024>}, {pipeline_mode = #tpu.pipeline_mode<synchronous>, transform_indices = @transform_1, window_bounds = array<i64: 1024, 10>}, {pipeline_mode = #tpu.pipeline_mode<synchronous>, transform_indices = @transform_2, window_bounds = array<i64: 1, 10>}, {transform_indices = @transform_3, window_bounds = array<i64: 152, 10>}]} {
    %c0 = arith.constant 0 : index
    %c0_0 = arith.constant 0 : index
    %0 = vector.load %arg1[%c0, %c0_0] : memref<152x1024xf32, #tpu.memory_space<vmem>>, vector<152x1024xf32>
    %1 = arith.truncf %0 : vector<152x1024xf32> to vector<152x1024xbf16>
    %c0_1 = arith.constant 0 : index
    %c0_2 = arith.constant 0 : index
    %2 = vector.load %arg2[%c0_1, %c0_2] : memref<1024x10xbf16, #tpu.memory_space<vmem>>, vector<1024x10xbf16>
    %cst = arith.constant dense<0.000000e+00> : vector<152x10xf32>
    %3 = tpu.matmul %1, %2, %cst {dimension_numbers = #tpu.dot_dimension_numbers<[1], [0], [0], [1], [0, 0, 1, 1], [], []>} : vector<152x1024xbf16>, vector<1024x10xbf16>, vector<152x10xf32> -> vector<152x10xf32>
    %c0_3 = arith.constant 0 : index
    %c0_4 = arith.constant 0 : index
    %4 = vector.load %arg3[%c0_3, %c0_4] : memref<1x10xf32, #tpu.memory_space<vmem>>, vector<1x10xf32>
    %5 = vector.broadcast %4 : vector<1x10xf32> to vector<152x10xf32>
    %6 = arith.addf %3, %5 : vector<152x10xf32>
    %cst_5 = arith.constant 0.000000e+00 : f32
    %7 = vector.broadcast %cst_5 : f32 to vector<152x10xf32>
    %8 = arith.cmpf oge, %6, %7 : vector<152x10xf32>
    %cst_6 = arith.constant 2.000000e-02 : f32
    %9 = vector.broadcast %cst_6 : f32 to vector<152x10xf32>
    %10 = arith.mulf %9, %6 : vector<152x10xf32>
    %11 = arith.select %8, %6, %10 : vector<152x10xi1>, vector<152x10xf32>
    %c0_7 = arith.constant 0 : index
    %c0_8 = arith.constant 0 : index
    %12 = vector.load %arg4[%c0_7, %c0_8] : memref<152x10xf32, #tpu.memory_space<vmem>>, vector<152x10xf32>
    tpu.vector_store %arg4[%c0_7, %c0_8], %11 {strides = array<i32>} : memref<152x10xf32, #tpu.memory_space<vmem>>, vector<152x10xf32>,
    return
  }
  func.func @transform_0(%arg0: i32) -> (i32, i32) {
    %c0_i32 = arith.constant 0 : i32
    %c0_i32_0 = arith.constant 0 : i32
    return %arg0, %c0_i32 : i32, i32
  }
  func.func @transform_1(%arg0: i32) -> (i32, i32) {
    %c0_i32 = arith.constant 0 : i32
    %c0_i32_0 = arith.constant 0 : i32
    %c0_i32_1 = arith.constant 0 : i32
    return %c0_i32, %c0_i32_0 : i32, i32
  }
  func.func @transform_2(%arg0: i32) -> (i32, i32) {
    %c0_i32 = arith.constant 0 : i32
    %c0_i32_0 = arith.constant 0 : i32
    %c0_i32_1 = arith.constant 0 : i32
    return %c0_i32, %c0_i32_0 : i32, i32
  }
  func.func @transform_3(%arg0: i32) -> (i32, i32) {
    %c0_i32 = arith.constant 0 : i32
    %c0_i32_0 = arith.constant 0 : i32
    return %arg0, %c0_i32 : i32, i32
  }
}

</mosaic_0001>

<llo_original>
// kernel: _forward_impl.1
$region0: #{_forward_impl.1}
  #allocation0 [shape = 'u32[]', space=smem, size = 0x4, offset = 0x4, fixed_abs, tag = 'smem constant byte address 0x4 - core index']
  #allocation1 [shape = 'u32[144,128]{1,0:T(1,128)}', space=vmem, size = 0x12000, scoped, tag = 'internal scratch']
  %s0 = inlined_call_operand.hbm [shape: f32[300,1024], index: 0, kind: input, shape index: {}]
  %s1 = inlined_call_operand.vmem [shape: bf16[1024,10], index: 1, kind: input, shape index: {}]
  %s2 = inlined_call_operand.hbm [shape: f32[1,10], index: 2, kind: input, shape index: {}]
  %s3 = inlined_call_operand.vmem [shape: f32[300,10], index: 3, kind: output, shape index: {}]
  %s4 = sld [smem:[#allocation0]]
  $region53: #{_forward_impl.1} parent=0
    _
  %s6 = ssub.s32 1, %s4
  %s7 = scalar_select 0, %s6, %s4
  $region1: #{_forward_impl.1} parent=0
    #allocation2 [shape = 'u8[1245184]{0}', space=vmem, size = 0x130000, scoped, tag = 'input window, operand 0']
    #allocation3 [shape = 's32[2]{0}', space=sflag, size = 0x8, scoped, tag = 'scoped memory for _forward_impl.1']
    #allocation4 [shape = 'u8[512]{0}', space=vmem, size = 0x400, scoped, tag = 'input window, operand 2, single buffered']
    #allocation5 [shape = 's32[1]{0}', space=sflag, size = 0x4, scoped, tag = 'scoped memory for _forward_impl.1']
    %8 = vsyncpa [#allocation3], 0
    %s9 = scalar_lea.sflag [#allocation3], 1
    %10 = vsyncpa %s9, 0
    %11 = vsyncpa [#allocation5], 0
    loop: start=0, step=1, limit=4
    $region2: #{_forward_impl.1} parent=1 // loop_pre_header
      _
    $region3: #{_forward_impl.1} parent=1 // loop_header
      %s13 = sphi 0, %s17
      %p14 = scmp.ge.s32.totalorder %s13, 4
      %s23 = sphi 0, %s25
      %s26 = sphi 0, %s23
      %s27 = sphi 0, %s26
      %s43 = sphi 0, %s27
      %s47 = sphi 0, %s47
      %s49 = sphi 0, %s47
      %s50 = sphi 0, %s49
      %s64 = sphi 0, %s50
      %s68 = sphi 0, %s68
      %s70 = sphi 0, %s68
      %s71 = sphi 0, %s70
      %s85 = sphi 0, %s71
      %s91 = sphi 0, %s93
      %s94 = sphi 0, %s91
      %s95 = sphi 0, %s94
      %s111 = sphi 0, %s95
    $region4: #{_forward_impl.1} parent=1 // loop_header_branch
      %16 = sbr.rel (%p14) target = $region8
    $region5: #{_forward_impl.1} parent=1 // loop_body
      %s18 = ssub.s32 %s13, 1
      %s19 = ssub.s32 %s13, 2
      %s20 = sadd.s32 %s13, 1
      %s21 = ssub.s32 %s13, %s20
      %p22 = scmp.eq.s32.totalorder %s21, 0
      %s24 = sadd.s32 %s23, 1
      %s25 = scalar_select %p22, %s23, %s24
      %p28 = pneg %p22
      %p29 = scmp.eq.s32.totalorder %s13, 1
      %p30 = por %p28, %p29
      %p31 = scmp.ne.s32.totalorder %s23, %s26
      %p32 = scmp.eq.s32.totalorder %s13, 0
      %p33 = por %p31, %p32
      %p34 = scmp.ne.s32.totalorder %s23, %s26
      %p35 = scmp.eq.s32.totalorder %s18, 1
      %p36 = por %p34, %p35
      %p37 = scmp.ne.s32.totalorder %s26, %s27
      %p38 = scmp.eq.s32.totalorder %s18, 0
      %p39 = por %p37, %p38
      %p40 = scmp.ne.s32.totalorder %s26, %s27
      %p41 = scmp.eq.s32.totalorder %s19, 1
      %p42 = por %p40, %p41
      %p44 = scmp.ne.s32.totalorder %s27, %s43
      %p45 = scmp.eq.s32.totalorder %s19, 0
      %p46 = por %p44, %p45
      %s48 = sadd.s32 %s47, 1
      %p51 = scmp.eq.s32.totalorder %s13, 1
      %p52 = scmp.ne.s32.totalorder %s47, %s49
      %p53 = scmp.eq.s32.totalorder %s13, 0
      %p54 = por %p52, %p53
      %p55 = scmp.ne.s32.totalorder %s47, %s49
      %p56 = scmp.eq.s32.totalorder %s18, 1
      %p57 = por %p55, %p56
      %p58 = scmp.ne.s32.totalorder %s49, %s50
      %p59 = scmp.eq.s32.totalorder %s18, 0
      %p60 = por %p58, %p59
      %p61 = scmp.ne.s32.totalorder %s49, %s50
      %p62 = scmp.eq.s32.totalorder %s19, 1
      %p63 = por %p61, %p62
      %p65 = scmp.ne.s32.totalorder %s50, %s64
      %p66 = scmp.eq.s32.totalorder %s19, 0
      %p67 = por %p65, %p66
      %s69 = sadd.s32 %s68, 1
      %p72 = scmp.eq.s32.totalorder %s13, 1
      %p73 = scmp.ne.s32.totalorder %s68, %s70
      %p74 = scmp.eq.s32.totalorder %s13, 0
      %p75 = por %p73, %p74
      %p76 = scmp.ne.s32.totalorder %s68, %s70
      %p77 = scmp.eq.s32.totalorder %s18, 1
      %p78 = por %p76, %p77
      %p79 = scmp.ne.s32.totalorder %s70, %s71
      %p80 = scmp.eq.s32.totalorder %s18, 0
      %p81 = por %p79, %p80
      %p82 = scmp.ne.s32.totalorder %s70, %s71
      %p83 = scmp.eq.s32.totalorder %s19, 1
      %p84 = por %p82, %p83
      %p86 = scmp.ne.s32.totalorder %s71, %s85
      %p87 = scmp.eq.s32.totalorder %s19, 0
      %p88 = por %p86, %p87
      %s89 = ssub.s32 %s13, %s20
      %p90 = scmp.eq.s32.totalorder %s89, 0
      %s92 = sadd.s32 %s91, 1
      %s93 = scalar_select %p90, %s91, %s92
      %p96 = pneg %p90
      %p97 = scmp.eq.s32.totalorder %s13, 1
      %p98 = por %p96, %p97
      %p99 = scmp.ne.s32.totalorder %s91, %s94
      %p100 = scmp.eq.s32.totalorder %s13, 0
      %p101 = por %p99, %p100
      %p102 = scmp.ne.s32.totalorder %s91, %s94
      %p103 = scmp.eq.s32.totalorder %s18, 1
      %p104 = por %p102, %p103
      %p105 = scmp.ne.s32.totalorder %s94, %s95
      %p106 = scmp.eq.s32.totalorder %s18, 0
      %p107 = por %p105, %p106
      %p108 = scmp.ne.s32.totalorder %s94, %s95
      %p109 = scmp.eq.s32.totalorder %s19, 1
      %p110 = por %p108, %p109
      %p112 = scmp.ne.s32.totalorder %s95, %s111
      %p113 = scmp.eq.s32.totalorder %s19, 0
      %p114 = por %p112, %p113
      %p115 = scmp.le.s32.totalorder 1, %s13
      %p116 = scmp.lt.s32.totalorder %s13, 3
      %p117 = pnand %p115, %p116
      %p118 = pneg %p117
      // Predicated region
      $region9: #{_forward_impl.1} parent=5 // pred_check
        _
      $region10: #{_forward_impl.1} parent=5 // pred_check_branch
        %120 = sbr.rel (%p117) target = $region12
      $region11: #{_forward_impl.1} parent=5 // pred_region
        %s121 = ssub.s32 %s13, 1
        // Predicated region
        $region13: #{_forward_impl.1} parent=11 // pred_check
          %p122 = pneg %p60
        $region14: #{_forward_impl.1} parent=11 // pred_check_branch
          %124 = sbr.rel (%p122) target = $region16
        $region15: #{_forward_impl.1} parent=11 // pred_region
          _
        $region16: #{_forward_impl.1} parent=11 // pred_fallthru
          _
        // Predicated region
        $region17: #{_forward_impl.1} parent=11 // pred_check
          %p125 = pneg %p81
        $region18: #{_forward_impl.1} parent=11 // pred_check_branch
          %127 = sbr.rel (%p125) target = $region20
        $region19: #{_forward_impl.1} parent=11 // pred_region
          %s129 = ssub.s32 16, 16
          %130 = vsyncadd [#allocation5], %s129
          %s132 = sshll.u32 [#allocation4], 4
          %s133 = int_to_ptr.vmem [resolvable:$true] %s132
          %135 = dma.hbm_to_vmem [thread:$0]  %s2, 16, %s133, [#allocation5]
        $region20: #{_forward_impl.1} parent=11 // pred_fallthru
          _
      $region12: #{_forward_impl.1} parent=5 // pred_fallthru
        _
      %p136 = scmp.lt.s32.totalorder %s13, 2
      // Predicated region
      $region21: #{_forward_impl.1} parent=5 // pred_check
        %p137 = pneg %p136
      $region22: #{_forward_impl.1} parent=5 // pred_check_branch
        %139 = sbr.rel (%p137) target = $region24
      $region23: #{_forward_impl.1} parent=5 // pred_region
        // Predicated region
        $region25: #{_forward_impl.1} parent=23 // pred_check
          %p140 = pneg %p33
        $region26: #{_forward_impl.1} parent=23 // pred_check_branch
          %142 = sbr.rel (%p140) target = $region28
        $region27: #{_forward_impl.1} parent=23 // pred_region
          %s143 = sand.u32 %s23, 1
          %s144 = scalar_lea.sflag [#allocation3], %s143
          %s145 = sand.u32 %s23, 1
          %s146 = smul.addr %s145, 1216
          %s147 = scalar_lea.vmem [#allocation2], %s146
          %s148 = smul.u32 19, %s13
          %s150 = ssub.s32 19456, 19456
          %151 = vsyncadd %s144, %s150
          %s152 = smul.addr %s148, 8
          %s153 = smul.addr %s152, 128
          %s154 = scalar_lea.hbm %s0, %s153
          %s155 = sshll.u32 %s147, 4
          %s156 = int_to_ptr.vmem [resolvable:$true] %s155
          %161 = dma.hbm_to_vmem [thread:$0]  %s154, 19456, %s156, %s144, 1024, 1024, 64
        $region28: #{_forward_impl.1} parent=23 // pred_fallthru
          _
      $region24: #{_forward_impl.1} parent=5 // pred_fallthru
        _
      %p162 = scmp.le.s32.totalorder 1, %s13
      %p163 = scmp.lt.s32.totalorder %s13, 3
      %p164 = pnand %p162, %p163
      %p165 = pneg %p164
      // Predicated region
      $region29: #{_forward_impl.1} parent=5 // pred_check
        _
      $region30: #{_forward_impl.1} parent=5 // pred_check_branch
        %167 = sbr.rel (%p164) target = $region32
      $region31: #{_forward_impl.1} parent=5 // pred_region
        %s168 = ssub.s32 %s13, 1
        %s169 = sand.u32 %s26, 1
        %s170 = scalar_lea.sflag [#allocation3], %s169
        %s171 = sand.u32 %s26, 1
        %s172 = smul.addr %s171, 1216
        %s173 = scalar_lea.vmem [#allocation2], %s172
        // Predicated region
        $region33: #{_forward_impl.1} parent=31 // pred_check
          %p174 = pneg %p39
        $region34: #{_forward_impl.1} parent=31 // pred_check_branch
          %176 = sbr.rel (%p174) target = $region36
        $region35: #{_forward_impl.1} parent=31 // pred_region
          %177 = dma.done %s170, 19456
        $region36: #{_forward_impl.1} parent=31 // pred_fallthru
          _
        // Predicated region
        $region37: #{_forward_impl.1} parent=31 // pred_check
          %p178 = pneg %p81
        $region38: #{_forward_impl.1} parent=31 // pred_check_branch
          %180 = sbr.rel (%p178) target = $region40
        $region39: #{_forward_impl.1} parent=31 // pred_region
          %181 = dma.done [#allocation5], 16
        $region40: #{_forward_impl.1} parent=31 // pred_fallthru
          _
        %s182 = sand.u32 %s26, 1
        %s183 = scalar_lea.sflag [#allocation3], %s182
        %s184 = sand.u32 %s26, 1
        %s185 = smul.addr %s184, 1216
        %s186 = scalar_lea.vmem [#allocation2], %s185
        %p187 = pneg %p39
        %p188 = pneg %p36
        %p189 = pneg %p60
        %p190 = pneg %p57
        %p191 = pneg %p81
        %p192 = pneg %p78
        %p193 = pneg %p107
        %p194 = pneg %p104
        %s195 = smul.u32 19, %s18
        %p196 = scmp.lt.s32.totalorder %s195, 37
        %s197 = scalar_select %p196, %s195, 37
        %s198 = smul.addr %s197, 8
        %s199 = scalar_lea.vmem %s3, %s198
        %s200 = smul.u32 19, %s18
        %s201 = smul.u32 19, %s18
        %p202 = scmp.lt.s32.totalorder %s201, 37
        %s203 = scalar_select %p202, %s201, 37
        %s204 = smul.addr %s203, 8
        %s205 = scalar_lea.vmem %s3, %s204
        %s206 = smul.u32 19, %s18
        %v208 = vld [vmem:[%s173] sm:$0xff]
        %v209 = vld [vmem:[%s173 + $0x8] sm:$0xff]
        %v210 = vld [vmem:[%s173 + $0x10] sm:$0xff]
        %v211 = vld [vmem:[%s173 + $0x18] sm:$0xff]
        %v212 = vld [vmem:[%s173 + $0x20] sm:$0xff]
        %v213 = vld [vmem:[%s173 + $0x28] sm:$0xff]
        %v214 = vld [vmem:[%s173 + $0x30] sm:$0xff]
        %v215 = vld [vmem:[%s173 + $0x38] sm:$0xff]
        %v216 = vld [vmem:[%s173 + $0x40] sm:$0xff]
        %v217 = vld [vmem:[%s173 + $0x48] sm:$0xff]
        %v218 = vld [vmem:[%s173 + $0x50] sm:$0xff]
        %v219 = vld [vmem:[%s173 + $0x58] sm:$0xff]
        %v220 = vld [vmem:[%s173 + $0x60] sm:$0xff]
        %v221 = vld [vmem:[%s173 + $0x68] sm:$0xff]
        %v222 = vld [vmem:[%s173 + $0x70] sm:$0xff]
        %v223 = vld [vmem:[%s173 + $0x78] sm:$0xff]
        %v224 = vld [vmem:[%s173 + $0x80] sm:$0xff]
        %v225 = vld [vmem:[%s173 + $0x88] sm:$0xff]
        %v226 = vld [vmem:[%s173 + $0x90] sm:$0xff]
        %v227 = vld [vmem:[%s173 + $0x98] sm:$0xff]
        %v228 = vld [vmem:[%s173 + $0xa0] sm:$0xff]
        %v229 = vld [vmem:[%s173 + $0xa8] sm:$0xff]
        %v230 = vld [vmem:[%s173 + $0xb0] sm:$0xff]
        %v231 = vld [vmem:[%s173 + $0xb8] sm:$0xff]
        %v232 = vld [vmem:[%s173 + $0xc0] sm:$0xff]
        %v233 = vld [vmem:[%s173 + $0xc8] sm:$0xff]
        %v234 = vld [vmem:[%s173 + $0xd0] sm:$0xff]
        %v235 = vld [vmem:[%s173 + $0xd8] sm:$0xff]
        %v236 = vld [vmem:[%s173 + $0xe0] sm:$0xff]
        %v237 = vld [vmem:[%s173 + $0xe8] sm:$0xff]
        %v238 = vld [vmem:[%s173 + $0xf0] sm:$0xff]
        %v239 = vld [vmem:[%s173 + $0xf8] sm:$0xff]
        %v240 = vld [vmem:[%s173 + $0x100] sm:$0xff]
        %v241 = vld [vmem:[%s173 + $0x108] sm:$0xff]
        %v242 = vld [vmem:[%s173 + $0x110] sm:$0xff]
        %v243 = vld [vmem:[%s173 + $0x118] sm:$0xff]
        %v244 = vld [vmem:[%s173 + $0x120] sm:$0xff]
        %v245 = vld [vmem:[%s173 + $0x128] sm:$0xff]
        %v246 = vld [vmem:[%s173 + $0x130] sm:$0xff]
        %v247 = vld [vmem:[%s173 + $0x138] sm:$0xff]
        %v248 = vld [vmem:[%s173 + $0x140] sm:$0xff]
        %v249 = vld [vmem:[%s173 + $0x148] sm:$0xff]
        %v250 = vld [vmem:[%s173 + $0x150] sm:$0xff]
        %v251 = vld [vmem:[%s173 + $0x158] sm:$0xff]
        %v252 = vld [vmem:[%s173 + $0x160] sm:$0xff]
        %v253 = vld [vmem:[%s173 + $0x168] sm:$0xff]
        %v254 = vld [vmem:[%s173 + $0x170] sm:$0xff]
        %v255 = vld [vmem:[%s173 + $0x178] sm:$0xff]
        %v256 = vld [vmem:[%s173 + $0x180] sm:$0xff]
        %v257 = vld [vmem:[%s173 + $0x188] sm:$0xff]
        %v258 = vld [vmem:[%s173 + $0x190] sm:$0xff]
        %v259 = vld [vmem:[%s173 + $0x198] sm:$0xff]
        %v260 = vld [vmem:[%s173 + $0x1a0] sm:$0xff]
        %v261 = vld [vmem:[%s173 + $0x1a8] sm:$0xff]
        %v262 = vld [vmem:[%s173 + $0x1b0] sm:$0xff]
        %v263 = vld [vmem:[%s173 + $0x1b8] sm:$0xff]
        %v264 = vld [vmem:[%s173 + $0x1c0] sm:$0xff]
        %v265 = vld [vmem:[%s173 + $0x1c8] sm:$0xff]
        %v266 = vld [vmem:[%s173 + $0x1d0] sm:$0xff]
        %v267 = vld [vmem:[%s173 + $0x1d8] sm:$0xff]
        %v268 = vld [vmem:[%s173 + $0x1e0] sm:$0xff]
        %v269 = vld [vmem:[%s173 + $0x1e8] sm:$0xff]
        %v270 = vld [vmem:[%s173 + $0x1f0] sm:$0xff]
        %v271 = vld [vmem:[%s173 + $0x1f8] sm:$0xff]
        %v272 = vld [vmem:[%s173 + $0x200] sm:$0xff]
        %v273 = vld [vmem:[%s173 + $0x208] sm:$0xff]
        %v274 = vld [vmem:[%s173 + $0x210] sm:$0xff]
        %v275 = vld [vmem:[%s173 + $0x218] sm:$0xff]
        %v276 = vld [vmem:[%s173 + $0x220] sm:$0xff]
        %v277 = vld [vmem:[%s173 + $0x228] sm:$0xff]
        %v278 = vld [vmem:[%s173 + $0x230] sm:$0xff]
        %v279 = vld [vmem:[%s173 + $0x238] sm:$0xff]
        %v280 = vld [vmem:[%s173 + $0x240] sm:$0xff]
        %v281 = vld [vmem:[%s173 + $0x248] sm:$0xff]
        %v282 = vld [vmem:[%s173 + $0x250] sm:$0xff]
        %v283 = vld [vmem:[%s173 + $0x258] sm:$0xff]
        %v284 = vld [vmem:[%s173 + $0x260] sm:$0xff]
        %v285 = vld [vmem:[%s173 + $0x268] sm:$0xff]
        %v286 = vld [vmem:[%s173 + $0x270] sm:$0xff]
        %v287 = vld [vmem:[%s173 + $0x278] sm:$0xff]
        %v288 = vld [vmem:[%s173 + $0x280] sm:$0xff]
        %v289 = vld [vmem:[%s173 + $0x288] sm:$0xff]
        %v290 = vld [vmem:[%s173 + $0x290] sm:$0xff]
        %v291 = vld [vmem:[%s173 + $0x298] sm:$0xff]
        %v292 = vld [vmem:[%s173 + $0x2a0] sm:$0xff]
        %v293 = vld [vmem:[%s173 + $0x2a8] sm:$0xff]
        %v294 = vld [vmem:[%s173 + $0x2b0] sm:$0xff]
        %v295 = vld [vmem:[%s173 + $0x2b8] sm:$0xff]
        %v296 = vld [vmem:[%s173 + $0x2c0] sm:$0xff]
        %v297 = vld [vmem:[%s173 + $0x2c8] sm:$0xff]
        %v298 = vld [vmem:[%s173 + $0x2d0] sm:$0xff]
        %v299 = vld [vmem:[%s173 + $0x2d8] sm:$0xff]
        %v300 = vld [vmem:[%s173 + $0x2e0] sm:$0xff]
        %v301 = vld [vmem:[%s173 + $0x2e8] sm:$0xff]
        %v302 = vld [vmem:[%s173 + $0x2f0] sm:$0xff]
        %v303 = vld [vmem:[%s173 + $0x2f8] sm:$0xff]
        %v304 = vld [vmem:[%s173 + $0x300] sm:$0xff]
        %v305 = vld [vmem:[%s173 + $0x308] sm:$0xff]
        %v306 = vld [vmem:[%s173 + $0x310] sm:$0xff]
        %v307 = vld [vmem:[%s173 + $0x318] sm:$0xff]
        %v308 = vld [vmem:[%s173 + $0x320] sm:$0xff]
        %v309 = vld [vmem:[%s173 + $0x328] sm:$0xff]
        %v310 = vld [vmem:[%s173 + $0x330] sm:$0xff]
        %v311 = vld [vmem:[%s173 + $0x338] sm:$0xff]
        %v312 = vld [vmem:[%s173 + $0x340] sm:$0xff]
        %v313 = vld [vmem:[%s173 + $0x348] sm:$0xff]
        %v314 = vld [vmem:[%s173 + $0x350] sm:$0xff]
        %v315 = vld [vmem:[%s173 + $0x358] sm:$0xff]
        %v316 = vld [vmem:[%s173 + $0x360] sm:$0xff]
        %v317 = vld [vmem:[%s173 + $0x368] sm:$0xff]
        %v318 = vld [vmem:[%s173 + $0x370] sm:$0xff]
        %v319 = vld [vmem:[%s173 + $0x378] sm:$0xff]
        %v320 = vld [vmem:[%s173 + $0x380] sm:$0xff]
        %v321 = vld [vmem:[%s173 + $0x388] sm:$0xff]
        %v322 = vld [vmem:[%s173 + $0x390] sm:$0xff]
        %v323 = vld [vmem:[%s173 + $0x398] sm:$0xff]
        %v324 = vld [vmem:[%s173 + $0x3a0] sm:$0xff]
        %v325 = vld [vmem:[%s173 + $0x3a8] sm:$0xff]
        %v326 = vld [vmem:[%s173 + $0x3b0] sm:$0xff]
        %v327 = vld [vmem:[%s173 + $0x3b8] sm:$0xff]
        %v328 = vld [vmem:[%s173 + $0x3c0] sm:$0xff]
        %v329 = vld [vmem:[%s173 + $0x3c8] sm:$0xff]
        %v330 = vld [vmem:[%s173 + $0x3d0] sm:$0xff]
        %v331 = vld [vmem:[%s173 + $0x3d8] sm:$0xff]
        %v332 = vld [vmem:[%s173 + $0x3e0] sm:$0xff]
        %v333 = vld [vmem:[%s173 + $0x3e8] sm:$0xff]
        %v334 = vld [vmem:[%s173 + $0x3f0] sm:$0xff]
        %v335 = vld [vmem:[%s173 + $0x3f8] sm:$0xff]
        %v336 = vld [vmem:[%s173 + $0x400] sm:$0xff]
        %v337 = vld [vmem:[%s173 + $0x408] sm:$0xff]
        %v338 = vld [vmem:[%s173 + $0x410] sm:$0xff]
        %v339 = vld [vmem:[%s173 + $0x418] sm:$0xff]
        %v340 = vld [vmem:[%s173 + $0x420] sm:$0xff]
        %v341 = vld [vmem:[%s173 + $0x428] sm:$0xff]
        %v342 = vld [vmem:[%s173 + $0x430] sm:$0xff]
        %v343 = vld [vmem:[%s173 + $0x438] sm:$0xff]
        %v344 = vld [vmem:[%s173 + $0x440] sm:$0xff]
        %v345 = vld [vmem:[%s173 + $0x448] sm:$0xff]
        %v346 = vld [vmem:[%s173 + $0x450] sm:$0xff]
        %v347 = vld [vmem:[%s173 + $0x458] sm:$0xff]
        %v348 = vld [vmem:[%s173 + $0x460] sm:$0xff]
        %v349 = vld [vmem:[%s173 + $0x468] sm:$0xff]
        %v350 = vld [vmem:[%s173 + $0x470] sm:$0xff]
        %v351 = vld [vmem:[%s173 + $0x478] sm:$0xff]
        %v352 = vld [vmem:[%s173 + $0x480] sm:$0xff]
        %v353 = vld [vmem:[%s173 + $0x488] sm:$0xff]
        %v354 = vld [vmem:[%s173 + $0x490] sm:$0xff]
        %v355 = vld [vmem:[%s173 + $0x498] sm:$0xff]
        %v356 = vld [vmem:[%s173 + $0x4a0] sm:$0xff]
        %v357 = vld [vmem:[%s173 + $0x4a8] sm:$0xff]
        %v358 = vld [vmem:[%s173 + $0x4b0] sm:$0xff]
        %v359 = vld [vmem:[%s173 + $0x4b8] sm:$0xff]
        %v360 = vpack.c.bf16 %v216, %v208
        %v361 = vpack.c.bf16 %v217, %v209
        %v362 = vpack.c.bf16 %v218, %v210
        %v363 = vpack.c.bf16 %v219, %v211
        %v364 = vpack.c.bf16 %v220, %v212
        %v365 = vpack.c.bf16 %v221, %v213
        %v366 = vpack.c.bf16 %v222, %v214
        %v367 = vpack.c.bf16 %v223, %v215
        %v368 = vpack.c.bf16 %v232, %v224
        %v369 = vpack.c.bf16 %v233, %v225
        %v370 = vpack.c.bf16 %v234, %v226
        %v371 = vpack.c.bf16 %v235, %v227
        %v372 = vpack.c.bf16 %v236, %v228
        %v373 = vpack.c.bf16 %v237, %v229
        %v374 = vpack.c.bf16 %v238, %v230
        %v375 = vpack.c.bf16 %v239, %v231
        %v376 = vpack.c.bf16 %v248, %v240
        %v377 = vpack.c.bf16 %v249, %v241
        %v378 = vpack.c.bf16 %v250, %v242
        %v379 = vpack.c.bf16 %v251, %v243
        %v380 = vpack.c.bf16 %v252, %v244
        %v381 = vpack.c.bf16 %v253, %v245
        %v382 = vpack.c.bf16 %v254, %v246
        %v383 = vpack.c.bf16 %v255, %v247
        %v384 = vpack.c.bf16 %v264, %v256
        %v385 = vpack.c.bf16 %v265, %v257
        %v386 = vpack.c.bf16 %v266, %v258
        %v387 = vpack.c.bf16 %v267, %v259
        %v388 = vpack.c.bf16 %v268, %v260
        %v389 = vpack.c.bf16 %v269, %v261
        %v390 = vpack.c.bf16 %v270, %v262
        %v391 = vpack.c.bf16 %v271, %v263
        %v392 = vpack.c.bf16 %v280, %v272
        %v393 = vpack.c.bf16 %v281, %v273
        %v394 = vpack.c.bf16 %v282, %v274
        %v395 = vpack.c.bf16 %v283, %v275
        %v396 = vpack.c.bf16 %v284, %v276
        %v397 = vpack.c.bf16 %v285, %v277
        %v398 = vpack.c.bf16 %v286, %v278
        %v399 = vpack.c.bf16 %v287, %v279
        %v400 = vpack.c.bf16 %v296, %v288
        %v401 = vpack.c.bf16 %v297, %v289
        %v402 = vpack.c.bf16 %v298, %v290
        %v403 = vpack.c.bf16 %v299, %v291
        %v404 = vpack.c.bf16 %v300, %v292
        %v405 = vpack.c.bf16 %v301, %v293
        %v406 = vpack.c.bf16 %v302, %v294
        %v407 = vpack.c.bf16 %v303, %v295
        %v408 = vpack.c.bf16 %v312, %v304
        %v409 = vpack.c.bf16 %v313, %v305
        %v410 = vpack.c.bf16 %v314, %v306
        %v411 = vpack.c.bf16 %v315, %v307
        %v412 = vpack.c.bf16 %v316, %v308
        %v413 = vpack.c.bf16 %v317, %v309
        %v414 = vpack.c.bf16 %v318, %v310
        %v415 = vpack.c.bf16 %v319, %v311
        %v416 = vpack.c.bf16 %v328, %v320
        %v417 = vpack.c.bf16 %v329, %v321
        %v418 = vpack.c.bf16 %v330, %v322
        %v419 = vpack.c.bf16 %v331, %v323
        %v420 = vpack.c.bf16 %v332, %v324
        %v421 = vpack.c.bf16 %v333, %v325
        %v422 = vpack.c.bf16 %v334, %v326
        %v423 = vpack.c.bf16 %v335, %v327
        %v424 = vpack.c.bf16 %v344, %v336
        %v425 = vpack.c.bf16 %v345, %v337
        %v426 = vpack.c.bf16 %v346, %v338
        %v427 = vpack.c.bf16 %v347, %v339
        %v428 = vpack.c.bf16 %v348, %v340
        %v429 = vpack.c.bf16 %v349, %v341
        %v430 = vpack.c.bf16 %v350, %v342
        %v431 = vpack.c.bf16 %v351, %v343
        %v432 = vpack.c.bf16 %v352, %v352
        %v433 = vpack.c.bf16 %v353, %v353
        %v434 = vpack.c.bf16 %v354, %v354
        %v435 = vpack.c.bf16 %v355, %v355
        %v436 = vpack.c.bf16 %v356, %v356
        %v437 = vpack.c.bf16 %v357, %v357
        %v438 = vpack.c.bf16 %v358, %v358
        %v439 = vpack.c.bf16 %v359, %v359
        %v440 = vld [vmem:[%s1] sm:$0xf]
        %v441 = vld [vmem:[%s1 + $0x4] sm:$0xf]
        %v442 = vld [vmem:[%s1 + $0x8] sm:$0xf]
        %v443 = vld [vmem:[%s1 + $0xc] sm:$0xf]
        %v444 = vld [vmem:[%s1 + $0x10] sm:$0xf]
        %v445 = vld [vmem:[%s1 + $0x14] sm:$0xf]
        %v446 = vld [vmem:[%s1 + $0x18] sm:$0xf]
        %v447 = vld [vmem:[%s1 + $0x1c] sm:$0xf]
        %v448 = vld [vmem:[%s1 + $0x20] sm:$0xf]
        %v449 = vld [vmem:[%s1 + $0x24] sm:$0xf]
        %v450 = vld [vmem:[%s1 + $0x28] sm:$0xf]
        %v451 = vld [vmem:[%s1 + $0x2c] sm:$0xf]
        %v452 = vld [vmem:[%s1 + $0x30] sm:$0xf]
        %v453 = vld [vmem:[%s1 + $0x34] sm:$0xf]
        %v454 = vld [vmem:[%s1 + $0x38] sm:$0xf]
        %v455 = vld [vmem:[%s1 + $0x3c] sm:$0xf]
        %v456 = vld [vmem:[%s1 + $0x40] sm:$0xf]
        %v457 = vld [vmem:[%s1 + $0x44] sm:$0xf]
        %v458 = vld [vmem:[%s1 + $0x48] sm:$0xf]
        %v459 = vld [vmem:[%s1 + $0x4c] sm:$0xf]
        %v460 = vld [vmem:[%s1 + $0x50] sm:$0xf]
        %v461 = vld [vmem:[%s1 + $0x54] sm:$0xf]
        %v462 = vld [vmem:[%s1 + $0x58] sm:$0xf]
        %v463 = vld [vmem:[%s1 + $0x5c] sm:$0xf]
        %v464 = vld [vmem:[%s1 + $0x60] sm:$0xf]
        %v465 = vld [vmem:[%s1 + $0x64] sm:$0xf]
        %v466 = vld [vmem:[%s1 + $0x68] sm:$0xf]
        %v467 = vld [vmem:[%s1 + $0x6c] sm:$0xf]
        %v468 = vld [vmem:[%s1 + $0x70] sm:$0xf]
        %v469 = vld [vmem:[%s1 + $0x74] sm:$0xf]
        %v470 = vld [vmem:[%s1 + $0x78] sm:$0xf]
        %v471 = vld [vmem:[%s1 + $0x7c] sm:$0xf]
        %v472 = vld [vmem:[%s1 + $0x80] sm:$0xf]
        %v473 = vld [vmem:[%s1 + $0x84] sm:$0xf]
        %v474 = vld [vmem:[%s1 + $0x88] sm:$0xf]
        %v475 = vld [vmem:[%s1 + $0x8c] sm:$0xf]
        %v476 = vld [vmem:[%s1 + $0x90] sm:$0xf]
        %v477 = vld [vmem:[%s1 + $0x94] sm:$0xf]
        %v478 = vld [vmem:[%s1 + $0x98] sm:$0xf]
        %v479 = vld [vmem:[%s1 + $0x9c] sm:$0xf]
        %v480 = vld [vmem:[%s1 + $0xa0] sm:$0xf]
        %v481 = vld [vmem:[%s1 + $0xa4] sm:$0xf]
        %v482 = vld [vmem:[%s1 + $0xa8] sm:$0xf]
        %v483 = vld [vmem:[%s1 + $0xac] sm:$0xf]
        %v484 = vld [vmem:[%s1 + $0xb0] sm:$0xf]
        %v485 = vld [vmem:[%s1 + $0xb4] sm:$0xf]
        %v486 = vld [vmem:[%s1 + $0xb8] sm:$0xf]
        %v487 = vld [vmem:[%s1 + $0xbc] sm:$0xf]
        %v488 = vld [vmem:[%s1 + $0xc0] sm:$0xf]
        %v489 = vld [vmem:[%s1 + $0xc4] sm:$0xf]
        %v490 = vld [vmem:[%s1 + $0xc8] sm:$0xf]
        %v491 = vld [vmem:[%s1 + $0xcc] sm:$0xf]
        %v492 = vld [vmem:[%s1 + $0xd0] sm:$0xf]
        %v493 = vld [vmem:[%s1 + $0xd4] sm:$0xf]
        %v494 = vld [vmem:[%s1 + $0xd8] sm:$0xf]
        %v495 = vld [vmem:[%s1 + $0xdc] sm:$0xf]
        %v496 = vld [vmem:[%s1 + $0xe0] sm:$0xf]
        %v497 = vld [vmem:[%s1 + $0xe4] sm:$0xf]
        %v498 = vld [vmem:[%s1 + $0xe8] sm:$0xf]
        %v499 = vld [vmem:[%s1 + $0xec] sm:$0xf]
        %v500 = vld [vmem:[%s1 + $0xf0] sm:$0xf]
        %v501 = vld [vmem:[%s1 + $0xf4] sm:$0xf]
        %v502 = vld [vmem:[%s1 + $0xf8] sm:$0xf]
        %v503 = vld [vmem:[%s1 + $0xfc] sm:$0xf]
        %v504 = vld [vmem:[%s1 + $0x100] sm:$0xf]
        %v505 = vld [vmem:[%s1 + $0x104] sm:$0xf]
        %v506 = vld [vmem:[%s1 + $0x108] sm:$0xf]
        %v507 = vld [vmem:[%s1 + $0x10c] sm:$0xf]
        %v508 = vld [vmem:[%s1 + $0x110] sm:$0xf]
        %v509 = vld [vmem:[%s1 + $0x114] sm:$0xf]
        %v510 = vld [vmem:[%s1 + $0x118] sm:$0xf]
        %v511 = vld [vmem:[%s1 + $0x11c] sm:$0xf]
        %v512 = vld [vmem:[%s1 + $0x120] sm:$0xf]
        %v513 = vld [vmem:[%s1 + $0x124] sm:$0xf]
        %v514 = vld [vmem:[%s1 + $0x128] sm:$0xf]
        %v515 = vld [vmem:[%s1 + $0x12c] sm:$0xf]
        %v516 = vld [vmem:[%s1 + $0x130] sm:$0xf]
        %v517 = vld [vmem:[%s1 + $0x134] sm:$0xf]
        %v518 = vld [vmem:[%s1 + $0x138] sm:$0xf]
        %v519 = vld [vmem:[%s1 + $0x13c] sm:$0xf]
        %v520 = vld [vmem:[%s1 + $0x140] sm:$0xf]
        %v521 = vld [vmem:[%s1 + $0x144] sm:$0xf]
        %v522 = vld [vmem:[%s1 + $0x148] sm:$0xf]
        %v523 = vld [vmem:[%s1 + $0x14c] sm:$0xf]
        %v524 = vld [vmem:[%s1 + $0x150] sm:$0xf]
        %v525 = vld [vmem:[%s1 + $0x154] sm:$0xf]
        %v526 = vld [vmem:[%s1 + $0x158] sm:$0xf]
        %v527 = vld [vmem:[%s1 + $0x15c] sm:$0xf]
        %v528 = vld [vmem:[%s1 + $0x160] sm:$0xf]
        %v529 = vld [vmem:[%s1 + $0x164] sm:$0xf]
        %v530 = vld [vmem:[%s1 + $0x168] sm:$0xf]
        %v531 = vld [vmem:[%s1 + $0x16c] sm:$0xf]
        %v532 = vld [vmem:[%s1 + $0x170] sm:$0xf]
        %v533 = vld [vmem:[%s1 + $0x174] sm:$0xf]
        %v534 = vld [vmem:[%s1 + $0x178] sm:$0xf]
        %v535 = vld [vmem:[%s1 + $0x17c] sm:$0xf]
        %v536 = vld [vmem:[%s1 + $0x180] sm:$0xf]
        %v537 = vld [vmem:[%s1 + $0x184] sm:$0xf]
        %v538 = vld [vmem:[%s1 + $0x188] sm:$0xf]
        %v539 = vld [vmem:[%s1 + $0x18c] sm:$0xf]
        %v540 = vld [vmem:[%s1 + $0x190] sm:$0xf]
        %v541 = vld [vmem:[%s1 + $0x194] sm:$0xf]
        %v542 = vld [vmem:[%s1 + $0x198] sm:$0xf]
        %v543 = vld [vmem:[%s1 + $0x19c] sm:$0xf]
        %v544 = vld [vmem:[%s1 + $0x1a0] sm:$0xf]
        %v545 = vld [vmem:[%s1 + $0x1a4] sm:$0xf]
        %v546 = vld [vmem:[%s1 + $0x1a8] sm:$0xf]
        %v547 = vld [vmem:[%s1 + $0x1ac] sm:$0xf]
        %v548 = vld [vmem:[%s1 + $0x1b0] sm:$0xf]
        %v549 = vld [vmem:[%s1 + $0x1b4] sm:$0xf]
        %v550 = vld [vmem:[%s1 + $0x1b8] sm:$0xf]
        %v551 = vld [vmem:[%s1 + $0x1bc] sm:$0xf]
        %v552 = vld [vmem:[%s1 + $0x1c0] sm:$0xf]
        %v553 = vld [vmem:[%s1 + $0x1c4] sm:$0xf]
        %v554 = vld [vmem:[%s1 + $0x1c8] sm:$0xf]
        %v555 = vld [vmem:[%s1 + $0x1cc] sm:$0xf]
        %v556 = vld [vmem:[%s1 + $0x1d0] sm:$0xf]
        %v557 = vld [vmem:[%s1 + $0x1d4] sm:$0xf]
        %v558 = vld [vmem:[%s1 + $0x1d8] sm:$0xf]
        %v559 = vld [vmem:[%s1 + $0x1dc] sm:$0xf]
        %v560 = vld [vmem:[%s1 + $0x1e0] sm:$0xf]
        %v561 = vld [vmem:[%s1 + $0x1e4] sm:$0xf]
        %v562 = vld [vmem:[%s1 + $0x1e8] sm:$0xf]
        %v563 = vld [vmem:[%s1 + $0x1ec] sm:$0xf]
        %v564 = vld [vmem:[%s1 + $0x1f0] sm:$0xf]
        %v565 = vld [vmem:[%s1 + $0x1f4] sm:$0xf]
        %v566 = vld [vmem:[%s1 + $0x1f8] sm:$0xf]
        %v567 = vld [vmem:[%s1 + $0x1fc] sm:$0xf]
        %v568 = vld [vmem:[#allocation4] sm:$0x1]
        %v570 = vlaneseq
        %v571 = vshrl.u32 %v570, 7
        %v572 = vsub.s32 0, %v571
        %v573 = vrot.slane %v568, %v572
        %v703 = vunpack.c.l.b16 %v440
        %v704 = vunpack.c.l.b16 %v441
        %v705 = vunpack.c.l.b16 %v442
        %v706 = vunpack.c.l.b16 %v443
        %v707 = vunpack.c.l.b16 %v444
        %v708 = vunpack.c.l.b16 %v445
        %v709 = vunpack.c.l.b16 %v446
        %v710 = vunpack.c.l.b16 %v447
        %v711 = vunpack.c.l.b16 %v448
        %v712 = vunpack.c.l.b16 %v449
        %v713 = vunpack.c.l.b16 %v450
        %v714 = vunpack.c.l.b16 %v451
        %v715 = vunpack.c.l.b16 %v452
        %v716 = vunpack.c.l.b16 %v453
        %v717 = vunpack.c.l.b16 %v454
        %v718 = vunpack.c.l.b16 %v455
        %v719 = vunpack.c.l.b16 %v456
        %v720 = vunpack.c.l.b16 %v457
        %v721 = vunpack.c.l.b16 %v458
        %v722 = vunpack.c.l.b16 %v459
        %v723 = vunpack.c.l.b16 %v460
        %v724 = vunpack.c.l.b16 %v461
        %v725 = vunpack.c.l.b16 %v462
        %v726 = vunpack.c.l.b16 %v463
        %v727 = vunpack.c.l.b16 %v464
        %v728 = vunpack.c.l.b16 %v465
        %v729 = vunpack.c.l.b16 %v466
        %v730 = vunpack.c.l.b16 %v467
        %v731 = vunpack.c.l.b16 %v468
        %v732 = vunpack.c.l.b16 %v469
        %v733 = vunpack.c.l.b16 %v470
        %v734 = vunpack.c.l.b16 %v471
        %v735 = vunpack.c.l.b16 %v472
        %v736 = vunpack.c.l.b16 %v473
        %v737 = vunpack.c.l.b16 %v474
        %v738 = vunpack.c.l.b16 %v475
        %v739 = vunpack.c.l.b16 %v476
        %v740 = vunpack.c.l.b16 %v477
        %v741 = vunpack.c.l.b16 %v478
        %v742 = vunpack.c.l.b16 %v479
        %v743 = vunpack.c.l.b16 %v480
        %v744 = vunpack.c.l.b16 %v481
        %v745 = vunpack.c.l.b16 %v482
        %v746 = vunpack.c.l.b16 %v483
        %v747 = vunpack.c.l.b16 %v484
        %v748 = vunpack.c.l.b16 %v485
        %v749 = vunpack.c.l.b16 %v486
        %v750 = vunpack.c.l.b16 %v487
        %v751 = vunpack.c.l.b16 %v488
        %v752 = vunpack.c.l.b16 %v489
        %v753 = vunpack.c.l.b16 %v490
        %v754 = vunpack.c.l.b16 %v491
        %v755 = vunpack.c.l.b16 %v492
        %v756 = vunpack.c.l.b16 %v493
        %v757 = vunpack.c.l.b16 %v494
        %v758 = vunpack.c.l.b16 %v495
        %v759 = vunpack.c.l.b16 %v496
        %v760 = vunpack.c.l.b16 %v497
        %v761 = vunpack.c.l.b16 %v498
        %v762 = vunpack.c.l.b16 %v499
        %v763 = vunpack.c.l.b16 %v500
        %v764 = vunpack.c.l.b16 %v501
        %v765 = vunpack.c.l.b16 %v502
        %v766 = vunpack.c.l.b16 %v503
        %v767 = vunpack.c.l.b16 %v504
        %v768 = vunpack.c.l.b16 %v505
        %v769 = vunpack.c.l.b16 %v506
        %v770 = vunpack.c.l.b16 %v507
        %v771 = vunpack.c.l.b16 %v508
        %v772 = vunpack.c.l.b16 %v509
        %v773 = vunpack.c.l.b16 %v510
        %v774 = vunpack.c.l.b16 %v511
        %v775 = vunpack.c.l.b16 %v512
        %v776 = vunpack.c.l.b16 %v513
        %v777 = vunpack.c.l.b16 %v514
        %v778 = vunpack.c.l.b16 %v515
        %v779 = vunpack.c.l.b16 %v516
        %v780 = vunpack.c.l.b16 %v517
        %v781 = vunpack.c.l.b16 %v518
        %v782 = vunpack.c.l.b16 %v519
        %v783 = vunpack.c.l.b16 %v520
        %v784 = vunpack.c.l.b16 %v521
        %v785 = vunpack.c.l.b16 %v522
        %v786 = vunpack.c.l.b16 %v523
        %v787 = vunpack.c.l.b16 %v524
        %v788 = vunpack.c.l.b16 %v525
        %v789 = vunpack.c.l.b16 %v526
        %v790 = vunpack.c.l.b16 %v527
        %v791 = vunpack.c.l.b16 %v528
        %v792 = vunpack.c.l.b16 %v529
        %v793 = vunpack.c.l.b16 %v530
        %v794 = vunpack.c.l.b16 %v531
        %v795 = vunpack.c.l.b16 %v532
        %v796 = vunpack.c.l.b16 %v533
        %v797 = vunpack.c.l.b16 %v534
        %v798 = vunpack.c.l.b16 %v535
        %v799 = vunpack.c.l.b16 %v536
        %v800 = vunpack.c.l.b16 %v537
        %v801 = vunpack.c.l.b16 %v538
        %v802 = vunpack.c.l.b16 %v539
        %v803 = vunpack.c.l.b16 %v540
        %v804 = vunpack.c.l.b16 %v541
        %v805 = vunpack.c.l.b16 %v542
        %v806 = vunpack.c.l.b16 %v543
        %v807 = vunpack.c.l.b16 %v544
        %v808 = vunpack.c.l.b16 %v545
        %v809 = vunpack.c.l.b16 %v546
        %v810 = vunpack.c.l.b16 %v547
        %v811 = vunpack.c.l.b16 %v548
        %v812 = vunpack.c.l.b16 %v549
        %v813 = vunpack.c.l.b16 %v550
        %v814 = vunpack.c.l.b16 %v551
        %v815 = vunpack.c.l.b16 %v552
        %v816 = vunpack.c.l.b16 %v553
        %v817 = vunpack.c.l.b16 %v554
        %v818 = vunpack.c.l.b16 %v555
        %v819 = vunpack.c.l.b16 %v556
        %v820 = vunpack.c.l.b16 %v557
        %v821 = vunpack.c.l.b16 %v558
        %v822 = vunpack.c.l.b16 %v559
        %v823 = vunpack.c.l.b16 %v560
        %v824 = vunpack.c.l.b16 %v561
        %v825 = vunpack.c.l.b16 %v562
        %v826 = vunpack.c.l.b16 %v563
        %v827 = vunpack.c.l.b16 %v564
        %v828 = vunpack.c.l.b16 %v565
        %v829 = vunpack.c.l.b16 %v566
        %v830 = vunpack.c.l.b16 %v567
        %v831 = vpack.c.b16 %v704, %v703
        %v832 = vpack.c.b16 %v706, %v705
        %v833 = vpack.c.b16 %v708, %v707
        %v834 = vpack.c.b16 %v710, %v709
        %v835 = vpack.c.b16 %v712, %v711
        %v836 = vpack.c.b16 %v714, %v713
        %v837 = vpack.c.b16 %v716, %v715
        %v838 = vpack.c.b16 %v718, %v717
        %v839 = vpack.c.b16 %v720, %v719
        %v840 = vpack.c.b16 %v722, %v721
        %v841 = vpack.c.b16 %v724, %v723
        %v842 = vpack.c.b16 %v726, %v725
        %v843 = vpack.c.b16 %v728, %v727
        %v844 = vpack.c.b16 %v730, %v729
        %v845 = vpack.c.b16 %v732, %v731
        %v846 = vpack.c.b16 %v734, %v733
        %v847 = vpack.c.b16 %v736, %v735
        %v848 = vpack.c.b16 %v738, %v737
        %v849 = vpack.c.b16 %v740, %v739
        %v850 = vpack.c.b16 %v742, %v741
        %v851 = vpack.c.b16 %v744, %v743
        %v852 = vpack.c.b16 %v746, %v745
        %v853 = vpack.c.b16 %v748, %v747
        %v854 = vpack.c.b16 %v750, %v749
        %v855 = vpack.c.b16 %v752, %v751
        %v856 = vpack.c.b16 %v754, %v753
        %v857 = vpack.c.b16 %v756, %v755
        %v858 = vpack.c.b16 %v758, %v757
        %v859 = vpack.c.b16 %v760, %v759
        %v860 = vpack.c.b16 %v762, %v761
        %v861 = vpack.c.b16 %v764, %v763
        %v862 = vpack.c.b16 %v766, %v765
        %v863 = vpack.c.b16 %v768, %v767
        %v864 = vpack.c.b16 %v770, %v769
        %v865 = vpack.c.b16 %v772, %v771
        %v866 = vpack.c.b16 %v774, %v773
        %v867 = vpack.c.b16 %v776, %v775
        %v868 = vpack.c.b16 %v778, %v777
        %v869 = vpack.c.b16 %v780, %v779
        %v870 = vpack.c.b16 %v782, %v781
        %v871 = vpack.c.b16 %v784, %v783
        %v872 = vpack.c.b16 %v786, %v785
        %v873 = vpack.c.b16 %v788, %v787
        %v874 = vpack.c.b16 %v790, %v789
        %v875 = vpack.c.b16 %v792, %v791
        %v876 = vpack.c.b16 %v794, %v793
        %v877 = vpack.c.b16 %v796, %v795
        %v878 = vpack.c.b16 %v798, %v797
        %v879 = vpack.c.b16 %v800, %v799
        %v880 = vpack.c.b16 %v802, %v801
        %v881 = vpack.c.b16 %v804, %v803
        %v882 = vpack.c.b16 %v806, %v805
        %v883 = vpack.c.b16 %v808, %v807
        %v884 = vpack.c.b16 %v810, %v809
        %v885 = vpack.c.b16 %v812, %v811
        %v886 = vpack.c.b16 %v814, %v813
        %v887 = vpack.c.b16 %v816, %v815
        %v888 = vpack.c.b16 %v818, %v817
        %v889 = vpack.c.b16 %v820, %v819
        %v890 = vpack.c.b16 %v822, %v821
        %v891 = vpack.c.b16 %v824, %v823
        %v892 = vpack.c.b16 %v826, %v825
        %v893 = vpack.c.b16 %v828, %v827
        %v894 = vpack.c.b16 %v830, %v829
        %959 = vmatprep.subr.bf16.mxu0 0
        %960 = vmatpush1.bf16.msra.mxu0 %v831
        %961 = vmatprep.subr.bf16.mxu0 0
        %962 = vmatpush1.bf16.msra.mxu0 %v832
        %963 = vmatprep.subr.bf16.mxu0 0
        %964 = vmatpush1.bf16.msra.mxu0 %v833
        %965 = vmatprep.subr.bf16.mxu0 0
        %966 = vmatpush1.bf16.msra.mxu0 %v834
        %967 = vmatprep.subr.bf16.mxu0 0
        %968 = vmatpush1.bf16.msra.mxu0 %v835
        %969 = vmatprep.subr.bf16.mxu0 0
        %970 = vmatpush1.bf16.msra.mxu0 %v836
        %971 = vmatprep.subr.bf16.mxu0 0
        %972 = vmatpush1.bf16.msra.mxu0 %v837
        %973 = vmatprep.subr.bf16.mxu0 0
        %974 = vmatpush1.bf16.msra.mxu0 %v838
        %975 = vmatprep.subr.bf16.mxu0 0
        %976 = vmatpush1.bf16.msra.mxu0 %v839
        %977 = vmatprep.subr.bf16.mxu0 0
        %978 = vmatpush1.bf16.msra.mxu0 %v840
        %979 = vmatprep.subr.bf16.mxu0 0
        %980 = vmatpush1.bf16.msra.mxu0 %v841
        %981 = vmatprep.subr.bf16.mxu0 0
        %982 = vmatpush1.bf16.msra.mxu0 %v842
        %983 = vmatprep.subr.bf16.mxu0 0
        %984 = vmatpush1.bf16.msra.mxu0 %v843
        %985 = vmatprep.subr.bf16.mxu0 0
        %986 = vmatpush1.bf16.msra.mxu0 %v844
        %987 = vmatprep.subr.bf16.mxu0 0
        %988 = vmatpush1.bf16.msra.mxu0 %v845
        %989 = vmatprep.subr.bf16.mxu0 0
        %990 = vmatpush1.bf16.msra.mxu0 %v846
        %991 = vmatprep.mubr.bf16.mxu0 %v361
        %992 = vmatmul.mubr.bf16.gmra.mrb[0].mxu0 %v360
        %v993 = vpop.f32.mrb[0].mxu0
        %v994 = vadd.f32 %v573, %v993
        %v995 = vpop.f32.mrb[0].mxu0
        %v996 = vpop.f32.mrb[0].mxu0
        %v997 = vadd.f32 %v573, %v996
        %v998 = vpop.f32.mrb[0].mxu0
        %999 = vmatprep.mubr.bf16.mxu0 %v369
        %1000 = vmatmul.mubr.bf16.gmra.mrb[0].mxu0 %v368
        %v1001 = vpop.f32.mrb[0].mxu0
        %v1002 = vadd.f32 %v573, %v1001
        %v1003 = vpop.f32.mrb[0].mxu0
        %v1004 = vpop.f32.mrb[0].mxu0
        %v1005 = vadd.f32 %v573, %v1004
        %v1006 = vpop.f32.mrb[0].mxu0
        %1007 = vmatprep.mubr.bf16.mxu0 %v377
        %1008 = vmatmul.mubr.bf16.gmra.mrb[0].mxu0 %v376
        %v1009 = vpop.f32.mrb[0].mxu0
        %v1010 = vadd.f32 %v573, %v1009
        %v1011 = vpop.f32.mrb[0].mxu0
        %v1012 = vpop.f32.mrb[0].mxu0
        %v1013 = vadd.f32 %v573, %v1012
        %v1014 = vpop.f32.mrb[0].mxu0
        %1015 = vmatprep.mubr.bf16.mxu0 %v385
        %1016 = vmatmul.mubr.bf16.gmra.mrb[0].mxu0 %v384
        %v1017 = vpop.f32.mrb[0].mxu0
        %v1018 = vadd.f32 %v573, %v1017
        %v1019 = vpop.f32.mrb[0].mxu0
        %v1020 = vpop.f32.mrb[0].mxu0
        %v1021 = vadd.f32 %v573, %v1020
        %v1022 = vpop.f32.mrb[0].mxu0
        %1023 = vmatprep.mubr.bf16.mxu0 %v393
        %1024 = vmatmul.mubr.bf16.gmra.mrb[0].mxu0 %v392
        %v1025 = vpop.f32.mrb[0].mxu0
        %v1026 = vadd.f32 %v573, %v1025
        %v1027 = vpop.f32.mrb[0].mxu0
        %v1028 = vpop.f32.mrb[0].mxu0
        %v1029 = vadd.f32 %v573, %v1028
        %v1030 = vpop.f32.mrb[0].mxu0
        %1031 = vmatprep.mubr.bf16.mxu0 %v401
        %1032 = vmatmul.mubr.bf16.gmra.mrb[0].mxu0 %v400
        %v1033 = vpop.f32.mrb[0].mxu0
        %v1034 = vadd.f32 %v573, %v1033
        %v1035 = vpop.f32.mrb[0].mxu0
        %v1036 = vpop.f32.mrb[0].mxu0
        %v1037 = vadd.f32 %v573, %v1036
        %v1038 = vpop.f32.mrb[0].mxu0
        %1039 = vmatprep.mubr.bf16.mxu0 %v409
        %1040 = vmatmul.mubr.bf16.gmra.mrb[0].mxu0 %v408
        %v1041 = vpop.f32.mrb[0].mxu0
        %v1042 = vadd.f32 %v573, %v1041
        %v1043 = vpop.f32.mrb[0].mxu0
        %v1044 = vpop.f32.mrb[0].mxu0
        %v1045 = vadd.f32 %v573, %v1044
        %v1046 = vpop.f32.mrb[0].mxu0
        %1047 = vmatprep.mubr.bf16.mxu0 %v417
        %1048 = vmatmul.mubr.bf16.gmra.mrb[0].mxu0 %v416
        %v1049 = vpop.f32.mrb[0].mxu0
        %v1050 = vadd.f32 %v573, %v1049
        %v1051 = vpop.f32.mrb[0].mxu0
        %v1052 = vpop.f32.mrb[0].mxu0
        %v1053 = vadd.f32 %v573, %v1052
        %v1054 = vpop.f32.mrb[0].mxu0
        %1055 = vmatprep.mubr.bf16.mxu0 %v425
        %1056 = vmatmul.mubr.bf16.gmra.mrb[0].mxu0 %v424
        %v1057 = vpop.f32.mrb[0].mxu0
        %v1058 = vadd.f32 %v573, %v1057
        %v1059 = vpop.f32.mrb[0].mxu0
        %v1060 = vpop.f32.mrb[0].mxu0
        %v1061 = vadd.f32 %v573, %v1060
        %v1062 = vpop.f32.mrb[0].mxu0
        %1063 = vmatprep.mubr.bf16.mxu0 %v433
        %1064 = vmatmul.mubr.bf16.gmra.mrb[0].mxu0 %v432
        %v1065 = vpop.f32.mrb[0].mxu0
        %v1066 = vadd.f32 %v573, %v1065
        %v1067 = vpop.f32.mrb[0].mxu0
        %v1068 = vpop.f32.mrb[0].mxu0
        %v1069 = vpop.f32.mrb[0].mxu0
        %1070 = vdwg.mxu0
        %1071 = vmatprep.subr.bf16.mxu0 0
        %1072 = vmatpush1.bf16.msra.mxu0 %v847
        %1073 = vmatprep.subr.bf16.mxu0 0
        %1074 = vmatpush1.bf16.msra.mxu0 %v848
        %1075 = vmatprep.subr.bf16.mxu0 0
        %1076 = vmatpush1.bf16.msra.mxu0 %v849
        %1077 = vmatprep.subr.bf16.mxu0 0
        %1078 = vmatpush1.bf16.msra.mxu0 %v850
        %1079 = vmatprep.subr.bf16.mxu0 0
        %1080 = vmatpush1.bf16.msra.mxu0 %v851
        %1081 = vmatprep.subr.bf16.mxu0 0
        %1082 = vmatpush1.bf16.msra.mxu0 %v852
        %1083 = vmatprep.subr.bf16.mxu0 0
        %1084 = vmatpush1.bf16.msra.mxu0 %v853
        %1085 = vmatprep.subr.bf16.mxu0 0
        %1086 = vmatpush1.bf16.msra.mxu0 %v854
        %1087 = vmatprep.subr.bf16.mxu0 0
        %1088 = vmatpush1.bf16.msra.mxu0 %v855
        %1089 = vmatprep.subr.bf16.mxu0 0
        %1090 = vmatpush1.bf16.msra.mxu0 %v856
        %1091 = vmatprep.subr.bf16.mxu0 0
        %1092 = vmatpush1.bf16.msra.mxu0 %v857
        %1093 = vmatprep.subr.bf16.mxu0 0
        %1094 = vmatpush1.bf16.msra.mxu0 %v858
        %1095 = vmatprep.subr.bf16.mxu0 0
        %1096 = vmatpush1.bf16.msra.mxu0 %v859
        %1097 = vmatprep.subr.bf16.mxu0 0
        %1098 = vmatpush1.bf16.msra.mxu0 %v860
        %1099 = vmatprep.subr.bf16.mxu0 0
        %1100 = vmatpush1.bf16.msra.mxu0 %v861
        %1101 = vmatprep.subr.bf16.mxu0 0
        %1102 = vmatpush1.bf16.msra.mxu0 %v862
        %1103 = vmatprep.mubr.bf16.mxu0 %v363
        %1104 = vmatmul.mubr.bf16.gmra.mrb[0].mxu0 %v362
        %v1105 = vpop.f32.mrb[0].mxu0
        %v1106 = vadd.f32 %v994, %v1105
        %v1107 = vpop.f32.mrb[0].mxu0
        %v1108 = vpop.f32.mrb[0].mxu0
        %v1109 = vadd.f32 %v997, %v1108
        %v1110 = vpop.f32.mrb[0].mxu0
        %1111 = vmatprep.mubr.bf16.mxu0 %v371
        %1112 = vmatmul.mubr.bf16.gmra.mrb[0].mxu0 %v370
        %v1113 = vpop.f32.mrb[0].mxu0
        %v1114 = vadd.f32 %v1002, %v1113
        %v1115 = vpop.f32.mrb[0].mxu0
        %v1116 = vpop.f32.mrb[0].mxu0
        %v1117 = vadd.f32 %v1005, %v1116
        %v1118 = vpop.f32.mrb[0].mxu0
        %1119 = vmatprep.mubr.bf16.mxu0 %v379
        %1120 = vmatmul.mubr.bf16.gmra.mrb[0].mxu0 %v378
        %v1121 = vpop.f32.mrb[0].mxu0
        %v1122 = vadd.f32 %v1010, %v1121
        %v1123 = vpop.f32.mrb[0].mxu0
        %v1124 = vpop.f32.mrb[0].mxu0
        %v1125 = vadd.f32 %v1013, %v1124
        %v1126 = vpop.f32.mrb[0].mxu0
        %1127 = vmatprep.mubr.bf16.mxu0 %v387
        %1128 = vmatmul.mubr.bf16.gmra.mrb[0].mxu0 %v386
        %v1129 = vpop.f32.mrb[0].mxu0
        %v1130 = vadd.f32 %v1018, %v1129
        %v1131 = vpop.f32.mrb[0].mxu0
        %v1132 = vpop.f32.mrb[0].mxu0
        %v1133 = vadd.f32 %v1021, %v1132
        %v1134 = vpop.f32.mrb[0].mxu0
        %1135 = vmatprep.mubr.bf16.mxu0 %v395
        %1136 = vmatmul.mubr.bf16.gmra.mrb[0].mxu0 %v394
        %v1137 = vpop.f32.mrb[0].mxu0
        %v1138 = vadd.f32 %v1026, %v1137
        %v1139 = vpop.f32.mrb[0].mxu0
        %v1140 = vpop.f32.mrb[0].mxu0
        %v1141 = vadd.f32 %v1029, %v1140
        %v1142 = vpop.f32.mrb[0].mxu0
        %1143 = vmatprep.mubr.bf16.mxu0 %v403
        %1144 = vmatmul.mubr.bf16.gmra.mrb[0].mxu0 %v402
        %v1145 = vpop.f32.mrb[0].mxu0
        %v1146 = vadd.f32 %v1034, %v1145
        %v1147 = vpop.f32.mrb[0].mxu0
        %v1148 = vpop.f32.mrb[0].mxu0
        %v1149 = vadd.f32 %v1037, %v1148
        %v1150 = vpop.f32.mrb[0].mxu0
        %1151 = vmatprep.mubr.bf16.mxu0 %v411
        %1152 = vmatmul.mubr.bf16.gmra.mrb[0].mxu0 %v410
        %v1153 = vpop.f32.mrb[0].mxu0
        %v1154 = vadd.f32 %v1042, %v1153
        %v1155 = vpop.f32.mrb[0].mxu0
        %v1156 = vpop.f32.mrb[0].mxu0
        %v1157 = vadd.f32 %v1045, %v1156
        %v1158 = vpop.f32.mrb[0].mxu0
        %1159 = vmatprep.mubr.bf16.mxu0 %v419
        %1160 = vmatmul.mubr.bf16.gmra.mrb[0].mxu0 %v418
        %v1161 = vpop.f32.mrb[0].mxu0
        %v1162 = vadd.f32 %v1050, %v1161
        %v1163 = vpop.f32.mrb[0].mxu0
        %v1164 = vpop.f32.mrb[0].mxu0
        %v1165 = vadd.f32 %v1053, %v1164
        %v1166 = vpop.f32.mrb[0].mxu0
        %1167 = vmatprep.mubr.bf16.mxu0 %v427
        %1168 = vmatmul.mubr.bf16.gmra.mrb[0].mxu0 %v426
        %v1169 = vpop.f32.mrb[0].mxu0
        %v1170 = vadd.f32 %v1058, %v1169
        %v1171 = vpop.f32.mrb[0].mxu0
        %v1172 = vpop.f32.mrb[0].mxu0
        %v1173 = vadd.f32 %v1061, %v1172
        %v1174 = vpop.f32.mrb[0].mxu0
        %1175 = vmatprep.mubr.bf16.mxu0 %v435
        %1176 = vmatmul.mubr.bf16.gmra.mrb[0].mxu0 %v434
        %v1177 = vpop.f32.mrb[0].mxu0
        %v1178 = vadd.f32 %v1066, %v1177
        %v1179 = vpop.f32.mrb[0].mxu0
        %v1180 = vpop.f32.mrb[0].mxu0
        %v1181 = vpop.f32.mrb[0].mxu0
        %1182 = vdwg.mxu0
        %1183 = vmatprep.subr.bf16.mxu0 0
        %1184 = vmatpush1.bf16.msra.mxu0 %v863
        %1185 = vmatprep.subr.bf16.mxu0 0
        %1186 = vmatpush1.bf16.msra.mxu0 %v864
        %1187 = vmatprep.subr.bf16.mxu0 0
        %1188 = vmatpush1.bf16.msra.mxu0 %v865
        %1189 = vmatprep.subr.bf16.mxu0 0
        %1190 = vmatpush1.bf16.msra.mxu0 %v866
        %1191 = vmatprep.subr.bf16.mxu0 0
        %1192 = vmatpush1.bf16.msra.mxu0 %v867
        %1193 = vmatprep.subr.bf16.mxu0 0
        %1194 = vmatpush1.bf16.msra.mxu0 %v868
        %1195 = vmatprep.subr.bf16.mxu0 0
        %1196 = vmatpush1.bf16.msra.mxu0 %v869
        %1197 = vmatprep.subr.bf16.mxu0 0
        %1198 = vmatpush1.bf16.msra.mxu0 %v870
        %1199 = vmatprep.subr.bf16.mxu0 0
        %1200 = vmatpush1.bf16.msra.mxu0 %v871
        %1201 = vmatprep.subr.bf16.mxu0 0
        %1202 = vmatpush1.bf16.msra.mxu0 %v872
        %1203 = vmatprep.subr.bf16.mxu0 0
        %1204 = vmatpush1.bf16.msra.mxu0 %v873
        %1205 = vmatprep.subr.bf16.mxu0 0
        %1206 = vmatpush1.bf16.msra.mxu0 %v874
        %1207 = vmatprep.subr.bf16.mxu0 0
        %1208 = vmatpush1.bf16.msra.mxu0 %v875
        %1209 = vmatprep.subr.bf16.mxu0 0
        %1210 = vmatpush1.bf16.msra.mxu0 %v876
        %1211 = vmatprep.subr.bf16.mxu0 0
        %1212 = vmatpush1.bf16.msra.mxu0 %v877
        %1213 = vmatprep.subr.bf16.mxu0 0
        %1214 = vmatpush1.bf16.msra.mxu0 %v878
        %1215 = vmatprep.mubr.bf16.mxu0 %v365
        %1216 = vmatmul.mubr.bf16.gmra.mrb[0].mxu0 %v364
        %v1217 = vpop.f32.mrb[0].mxu0
        %v1218 = vadd.f32 %v1106, %v1217
        %v1219 = vpop.f32.mrb[0].mxu0
        %v1220 = vpop.f32.mrb[0].mxu0
        %v1221 = vadd.f32 %v1109, %v1220
        %v1222 = vpop.f32.mrb[0].mxu0
        %1223 = vmatprep.mubr.bf16.mxu0 %v373
        %1224 = vmatmul.mubr.bf16.gmra.mrb[0].mxu0 %v372
        %v1225 = vpop.f32.mrb[0].mxu0
        %v1226 = vadd.f32 %v1114, %v1225
        %v1227 = vpop.f32.mrb[0].mxu0
        %v1228 = vpop.f32.mrb[0].mxu0
        %v1229 = vadd.f32 %v1117, %v1228
        %v1230 = vpop.f32.mrb[0].mxu0
        %1231 = vmatprep.mubr.bf16.mxu0 %v381
        %1232 = vmatmul.mubr.bf16.gmra.mrb[0].mxu0 %v380
        %v1233 = vpop.f32.mrb[0].mxu0
        %v1234 = vadd.f32 %v1122, %v1233
        %v1235 = vpop.f32.mrb[0].mxu0
        %v1236 = vpop.f32.mrb[0].mxu0
        %v1237 = vadd.f32 %v1125, %v1236
        %v1238 = vpop.f32.mrb[0].mxu0
        %1239 = vmatprep.mubr.bf16.mxu0 %v389
        %1240 = vmatmul.mubr.bf16.gmra.mrb[0].mxu0 %v388
        %v1241 = vpop.f32.mrb[0].mxu0
        %v1242 = vadd.f32 %v1130, %v1241
        %v1243 = vpop.f32.mrb[0].mxu0
        %v1244 = vpop.f32.mrb[0].mxu0
        %v1245 = vadd.f32 %v1133, %v1244
        %v1246 = vpop.f32.mrb[0].mxu0
        %1247 = vmatprep.mubr.bf16.mxu0 %v397
        %1248 = vmatmul.mubr.bf16.gmra.mrb[0].mxu0 %v396
        %v1249 = vpop.f32.mrb[0].mxu0
        %v1250 = vadd.f32 %v1138, %v1249
        %v1251 = vpop.f32.mrb[0].mxu0
        %v1252 = vpop.f32.mrb[0].mxu0
        %v1253 = vadd.f32 %v1141, %v1252
        %v1254 = vpop.f32.mrb[0].mxu0
        %1255 = vmatprep.mubr.bf16.mxu0 %v405
        %1256 = vmatmul.mubr.bf16.gmra.mrb[0].mxu0 %v404
        %v1257 = vpop.f32.mrb[0].mxu0
        %v1258 = vadd.f32 %v1146, %v1257
        %v1259 = vpop.f32.mrb[0].mxu0
        %v1260 = vpop.f32.mrb[0].mxu0
        %v1261 = vadd.f32 %v1149, %v1260
        %v1262 = vpop.f32.mrb[0].mxu0
        %1263 = vmatprep.mubr.bf16.mxu0 %v413
        %1264 = vmatmul.mubr.bf16.gmra.mrb[0].mxu0 %v412
        %v1265 = vpop.f32.mrb[0].mxu0
        %v1266 = vadd.f32 %v1154, %v1265
        %v1267 = vpop.f32.mrb[0].mxu0
        %v1268 = vpop.f32.mrb[0].mxu0
        %v1269 = vadd.f32 %v1157, %v1268
        %v1270 = vpop.f32.mrb[0].mxu0
        %1271 = vmatprep.mubr.bf16.mxu0 %v421
        %1272 = vmatmul.mubr.bf16.gmra.mrb[0].mxu0 %v420
        %v1273 = vpop.f32.mrb[0].mxu0
        %v1274 = vadd.f32 %v1162, %v1273
        %v1275 = vpop.f32.mrb[0].mxu0
        %v1276 = vpop.f32.mrb[0].mxu0
        %v1277 = vadd.f32 %v1165, %v1276
        %v1278 = vpop.f32.mrb[0].mxu0
        %1279 = vmatprep.mubr.bf16.mxu0 %v429
        %1280 = vmatmul.mubr.bf16.gmra.mrb[0].mxu0 %v428
        %v1281 = vpop.f32.mrb[0].mxu0
        %v1282 = vadd.f32 %v1170, %v1281
        %v1283 = vpop.f32.mrb[0].mxu0
        %v1284 = vpop.f32.mrb[0].mxu0
        %v1285 = vadd.f32 %v1173, %v1284
        %v1286 = vpop.f32.mrb[0].mxu0
        %1287 = vmatprep.mubr.bf16.mxu0 %v437
        %1288 = vmatmul.mubr.bf16.gmra.mrb[0].mxu0 %v436
        %v1289 = vpop.f32.mrb[0].mxu0
        %v1290 = vadd.f32 %v1178, %v1289
        %v1291 = vpop.f32.mrb[0].mxu0
        %v1292 = vpop.f32.mrb[0].mxu0
        %v1293 = vpop.f32.mrb[0].mxu0
        %1294 = vdwg.mxu0
        %1295 = vmatprep.subr.bf16.mxu0 0
        %1296 = vmatpush1.bf16.msra.mxu0 %v879
        %1297 = vmatprep.subr.bf16.mxu0 0
        %1298 = vmatpush1.bf16.msra.mxu0 %v880
        %1299 = vmatprep.subr.bf16.mxu0 0
        %1300 = vmatpush1.bf16.msra.mxu0 %v881
        %1301 = vmatprep.subr.bf16.mxu0 0
        %1302 = vmatpush1.bf16.msra.mxu0 %v882
        %1303 = vmatprep.subr.bf16.mxu0 0
        %1304 = vmatpush1.bf16.msra.mxu0 %v883
        %1305 = vmatprep.subr.bf16.mxu0 0
        %1306 = vmatpush1.bf16.msra.mxu0 %v884
        %1307 = vmatprep.subr.bf16.mxu0 0
        %1308 = vmatpush1.bf16.msra.mxu0 %v885
        %1309 = vmatprep.subr.bf16.mxu0 0
        %1310 = vmatpush1.bf16.msra.mxu0 %v886
        %1311 = vmatprep.subr.bf16.mxu0 0
        %1312 = vmatpush1.bf16.msra.mxu0 %v887
        %1313 = vmatprep.subr.bf16.mxu0 0
        %1314 = vmatpush1.bf16.msra.mxu0 %v888
        %1315 = vmatprep.subr.bf16.mxu0 0
        %1316 = vmatpush1.bf16.msra.mxu0 %v889
        %1317 = vmatprep.subr.bf16.mxu0 0
        %1318 = vmatpush1.bf16.msra.mxu0 %v890
        %1319 = vmatprep.subr.bf16.mxu0 0
        %1320 = vmatpush1.bf16.msra.mxu0 %v891
        %1321 = vmatprep.subr.bf16.mxu0 0
        %1322 = vmatpush1.bf16.msra.mxu0 %v892
        %1323 = vmatprep.subr.bf16.mxu0 0
        %1324 = vmatpush1.bf16.msra.mxu0 %v893
        %1325 = vmatprep.subr.bf16.mxu0 0
        %1326 = vmatpush1.bf16.msra.mxu0 %v894
        %1327 = vmatprep.mubr.bf16.mxu0 %v367
        %1328 = vmatmul.mubr.bf16.gmra.mrb[0].mxu0 %v366
        %v1329 = vpop.f32.mrb[0].mxu0
        %v1330 = vadd.f32 %v1218, %v1329
        %v1331 = vpop.f32.mrb[0].mxu0
        %v1332 = vpop.f32.mrb[0].mxu0
        %v1333 = vadd.f32 %v1221, %v1332
        %v1334 = vpop.f32.mrb[0].mxu0
        %1335 = vmatprep.mubr.bf16.mxu0 %v375
        %1336 = vmatmul.mubr.bf16.gmra.mrb[0].mxu0 %v374
        %v1337 = vpop.f32.mrb[0].mxu0
        %v1338 = vadd.f32 %v1226, %v1337
        %v1339 = vpop.f32.mrb[0].mxu0
        %v1340 = vpop.f32.mrb[0].mxu0
        %v1341 = vadd.f32 %v1229, %v1340
        %v1342 = vpop.f32.mrb[0].mxu0
        %1343 = vmatprep.mubr.bf16.mxu0 %v383
        %1344 = vmatmul.mubr.bf16.gmra.mrb[0].mxu0 %v382
        %v1345 = vpop.f32.mrb[0].mxu0
        %v1346 = vadd.f32 %v1234, %v1345
        %v1347 = vpop.f32.mrb[0].mxu0
        %v1348 = vpop.f32.mrb[0].mxu0
        %v1349 = vadd.f32 %v1237, %v1348
        %v1350 = vpop.f32.mrb[0].mxu0
        %1351 = vmatprep.mubr.bf16.mxu0 %v391
        %1352 = vmatmul.mubr.bf16.gmra.mrb[0].mxu0 %v390
        %v1353 = vpop.f32.mrb[0].mxu0
        %v1354 = vadd.f32 %v1242, %v1353
        %v1355 = vpop.f32.mrb[0].mxu0
        %v1356 = vpop.f32.mrb[0].mxu0
        %v1357 = vadd.f32 %v1245, %v1356
        %v1358 = vpop.f32.mrb[0].mxu0
        %1359 = vmatprep.mubr.bf16.mxu0 %v399
        %1360 = vmatmul.mubr.bf16.gmra.mrb[0].mxu0 %v398
        %v1361 = vpop.f32.mrb[0].mxu0
        %v1362 = vadd.f32 %v1250, %v1361
        %v1363 = vpop.f32.mrb[0].mxu0
        %v1364 = vpop.f32.mrb[0].mxu0
        %v1365 = vadd.f32 %v1253, %v1364
        %v1366 = vpop.f32.mrb[0].mxu0
        %1367 = vmatprep.mubr.bf16.mxu0 %v407
        %1368 = vmatmul.mubr.bf16.gmra.mrb[0].mxu0 %v406
        %v1369 = vpop.f32.mrb[0].mxu0
        %v1370 = vadd.f32 %v1258, %v1369
        %v1371 = vpop.f32.mrb[0].mxu0
        %v1372 = vpop.f32.mrb[0].mxu0
        %v1373 = vadd.f32 %v1261, %v1372
        %v1374 = vpop.f32.mrb[0].mxu0
        %1375 = vmatprep.mubr.bf16.mxu0 %v415
        %1376 = vmatmul.mubr.bf16.gmra.mrb[0].mxu0 %v414
        %v1377 = vpop.f32.mrb[0].mxu0
        %v1378 = vadd.f32 %v1266, %v1377
        %v1379 = vpop.f32.mrb[0].mxu0
        %v1380 = vpop.f32.mrb[0].mxu0
        %v1381 = vadd.f32 %v1269, %v1380
        %v1382 = vpop.f32.mrb[0].mxu0
        %1383 = vmatprep.mubr.bf16.mxu0 %v423
        %1384 = vmatmul.mubr.bf16.gmra.mrb[0].mxu0 %v422
        %v1385 = vpop.f32.mrb[0].mxu0
        %v1386 = vadd.f32 %v1274, %v1385
        %v1387 = vpop.f32.mrb[0].mxu0
        %v1388 = vpop.f32.mrb[0].mxu0
        %v1389 = vadd.f32 %v1277, %v1388
        %v1390 = vpop.f32.mrb[0].mxu0
        %1391 = vmatprep.mubr.bf16.mxu0 %v431
        %1392 = vmatmul.mubr.bf16.gmra.mrb[0].mxu0 %v430
        %v1393 = vpop.f32.mrb[0].mxu0
        %v1394 = vadd.f32 %v1282, %v1393
        %v1395 = vpop.f32.mrb[0].mxu0
        %v1396 = vpop.f32.mrb[0].mxu0
        %v1397 = vadd.f32 %v1285, %v1396
        %v1398 = vpop.f32.mrb[0].mxu0
        %1399 = vmatprep.mubr.bf16.mxu0 %v439
        %1400 = vmatmul.mubr.bf16.gmra.mrb[0].mxu0 %v438
        %v1401 = vpop.f32.mrb[0].mxu0
        %v1402 = vadd.f32 %v1290, %v1401
        %v1403 = vpop.f32.mrb[0].mxu0
        %v1404 = vpop.f32.mrb[0].mxu0
        %v1405 = vpop.f32.mrb[0].mxu0
        %1406 = vdwg.mxu0
        %vm1407 = vcmp.ge.f32.partialorder %v1330, 0.0
        %vm1408 = vcmp.ge.f32.partialorder %v1333, 0.0
        %vm1409 = vcmp.ge.f32.partialorder %v1338, 0.0
        %vm1410 = vcmp.ge.f32.partialorder %v1341, 0.0
        %vm1411 = vcmp.ge.f32.partialorder %v1346, 0.0
        %vm1412 = vcmp.ge.f32.partialorder %v1349, 0.0
        %vm1413 = vcmp.ge.f32.partialorder %v1354, 0.0
        %vm1414 = vcmp.ge.f32.partialorder %v1357, 0.0
        %vm1415 = vcmp.ge.f32.partialorder %v1362, 0.0
        %vm1416 = vcmp.ge.f32.partialorder %v1365, 0.0
        %vm1417 = vcmp.ge.f32.partialorder %v1370, 0.0
        %vm1418 = vcmp.ge.f32.partialorder %v1373, 0.0
        %vm1419 = vcmp.ge.f32.partialorder %v1378, 0.0
        %vm1420 = vcmp.ge.f32.partialorder %v1381, 0.0
        %vm1421 = vcmp.ge.f32.partialorder %v1386, 0.0
        %vm1422 = vcmp.ge.f32.partialorder %v1389, 0.0
        %vm1423 = vcmp.ge.f32.partialorder %v1394, 0.0
        %vm1424 = vcmp.ge.f32.partialorder %v1397, 0.0
        %vm1425 = vcmp.ge.f32.partialorder %v1402, 0.0
        %v1426 = vmul.f32 %v1330, 0.02
        %v1427 = vmul.f32 %v1333, 0.02
        %v1428 = vmul.f32 %v1338, 0.02
        %v1429 = vmul.f32 %v1341, 0.02
        %v1430 = vmul.f32 %v1346, 0.02
        %v1431 = vmul.f32 %v1349, 0.02
        %v1432 = vmul.f32 %v1354, 0.02
        %v1433 = vmul.f32 %v1357, 0.02
        %v1434 = vmul.f32 %v1362, 0.02
        %v1435 = vmul.f32 %v1365, 0.02
        %v1436 = vmul.f32 %v1370, 0.02
        %v1437 = vmul.f32 %v1373, 0.02
        %v1438 = vmul.f32 %v1378, 0.02
        %v1439 = vmul.f32 %v1381, 0.02
        %v1440 = vmul.f32 %v1386, 0.02
        %v1441 = vmul.f32 %v1389, 0.02
        %v1442 = vmul.f32 %v1394, 0.02
        %v1443 = vmul.f32 %v1397, 0.02
        %v1444 = vmul.f32 %v1402, 0.02
        %v1445 = vsel %vm1407, %v1330, %v1426
        %v1446 = vsel %vm1408, %v1333, %v1427
        %v1447 = vsel %vm1409, %v1338, %v1428
        %v1448 = vsel %vm1410, %v1341, %v1429
        %v1449 = vsel %vm1411, %v1346, %v1430
        %v1450 = vsel %vm1412, %v1349, %v1431
        %v1451 = vsel %vm1413, %v1354, %v1432
        %v1452 = vsel %vm1414, %v1357, %v1433
        %v1453 = vsel %vm1415, %v1362, %v1434
        %v1454 = vsel %vm1416, %v1365, %v1435
        %v1455 = vsel %vm1417, %v1370, %v1436
        %v1456 = vsel %vm1418, %v1373, %v1437
        %v1457 = vsel %vm1419, %v1378, %v1438
        %v1458 = vsel %vm1420, %v1381, %v1439
        %v1459 = vsel %vm1421, %v1386, %v1440
        %v1460 = vsel %vm1422, %v1389, %v1441
        %v1461 = vsel %vm1423, %v1394, %v1442
        %v1462 = vsel %vm1424, %v1397, %v1443
        %v1463 = vsel %vm1425, %v1402, %v1444
        %vm1464 = vcmask 80896
        %1465 = vst.msk [vmem:[%s205] sm:$0xff] %vm1464, %v1445
        %1466 = vst.msk [vmem:[%s205 + $0x8] sm:$0xff] %vm1464, %v1446
        %1467 = vst.msk [vmem:[%s205 + $0x10] sm:$0xff] %vm1464, %v1447
        %1468 = vst.msk [vmem:[%s205 + $0x18] sm:$0xff] %vm1464, %v1448
        %1469 = vst.msk [vmem:[%s205 + $0x20] sm:$0xff] %vm1464, %v1449
        %1470 = vst.msk [vmem:[%s205 + $0x28] sm:$0xff] %vm1464, %v1450
        %1471 = vst.msk [vmem:[%s205 + $0x30] sm:$0xff] %vm1464, %v1451
        %1472 = vst.msk [vmem:[%s205 + $0x38] sm:$0xff] %vm1464, %v1452
        %1473 = vst.msk [vmem:[%s205 + $0x40] sm:$0xff] %vm1464, %v1453
        %1474 = vst.msk [vmem:[%s205 + $0x48] sm:$0xff] %vm1464, %v1454
        %1475 = vst.msk [vmem:[%s205 + $0x50] sm:$0xff] %vm1464, %v1455
        %1476 = vst.msk [vmem:[%s205 + $0x58] sm:$0xff] %vm1464, %v1456
        %1477 = vst.msk [vmem:[%s205 + $0x60] sm:$0xff] %vm1464, %v1457
        %1478 = vst.msk [vmem:[%s205 + $0x68] sm:$0xff] %vm1464, %v1458
        %1479 = vst.msk [vmem:[%s205 + $0x70] sm:$0xff] %vm1464, %v1459
        %1480 = vst.msk [vmem:[%s205 + $0x78] sm:$0xff] %vm1464, %v1460
        %1481 = vst.msk [vmem:[%s205 + $0x80] sm:$0xff] %vm1464, %v1461
        %1482 = vst.msk [vmem:[%s205 + $0x88] sm:$0xff] %vm1464, %v1462
        %1483 = vst.msk [vmem:[%s205 + $0x90] sm:$0xff] %vm1464, %v1463
        %s1484 = smul.u32 19, %s18
        %p1485 = scmp.lt.s32.totalorder %s1484, 37
        %s1486 = scalar_select %p1485, %s1484, 37
        %s1487 = smul.addr %s1486, 8
        %s1488 = scalar_lea.vmem %s3, %s1487
        // Predicated region
        $region41: #{_forward_impl.1} parent=31 // pred_check
          %p1489 = pneg %p104
        $region42: #{_forward_impl.1} parent=31 // pred_check_branch
          %1491 = sbr.rel (%p1489) target = $region44
        $region43: #{_forward_impl.1} parent=31 // pred_region
          %s1492 = smul.u32 19, %s18
        $region44: #{_forward_impl.1} parent=31 // pred_fallthru
          _
      $region32: #{_forward_impl.1} parent=5 // pred_fallthru
        _
      %p1493 = scmp.le.s32.totalorder 2, %s13
      // Predicated region
      $region45: #{_forward_impl.1} parent=5 // pred_check
        %p1494 = pneg %p1493
      $region46: #{_forward_impl.1} parent=5 // pred_check_branch
        %1496 = sbr.rel (%p1494) target = $region48
      $region47: #{_forward_impl.1} parent=5 // pred_region
        %s1497 = ssub.s32 %s13, 2
        // Predicated region
        $region49: #{_forward_impl.1} parent=47 // pred_check
          %p1498 = pneg %p110
        $region50: #{_forward_impl.1} parent=47 // pred_check_branch
          %1500 = sbr.rel (%p1498) target = $region52
        $region51: #{_forward_impl.1} parent=47 // pred_region
          %s1501 = smul.u32 19, %s19
          %p1502 = scmp.lt.s32.totalorder %s1501, 37
          %s1503 = scalar_select %p1502, %s1501, 37
          %s1504 = smul.addr %s1503, 8
          %s1505 = scalar_lea.vmem %s3, %s1504
        $region52: #{_forward_impl.1} parent=47 // pred_fallthru
          _
      $region48: #{_forward_impl.1} parent=5 // pred_fallthru
        _
    $region6: #{_forward_impl.1} parent=1 // loop_footer
      %s17 = sadd.s32 1, %s13
    $region7: #{_forward_impl.1} parent=1 // loop_footer_branch
      %12 = sbr.rel target = $region3
    $region8: #{_forward_impl.1} parent=1 // loop_exit
      _
    %1506 = vsyncpa [#allocation3], 1
    %s1507 = scalar_lea.sflag [#allocation3], 1
    %1508 = vsyncpa %s1507, 1
    %1509 = vsyncpa [#allocation5], 1

</llo_original>
